<compile_context>
chip_gen: v7x
topology: tpu7x:2x2x1
jax: 0.10.0
libtpu: 0.0.40
codegen_flags: <defaults>
</compile_context>

<pallas_src>
import functools

import jax
import jax.numpy as jnp
from jax.experimental import pallas as pl
from jax.experimental.pallas import tpu as pltpu


def attention_layer_kernel(x_ref, wq_ref, wk_ref, wv_ref, out_ref, feat_ref, *,
                           mxu_bf16):
    TB, S, D = x_ref.shape
    dim_v = out_ref.shape[-1]

    x = x_ref[...]                                        # (TB, S, D), input dtype
    mxu_dtype = jnp.bfloat16 if mxu_bf16 else x.dtype

    # Three separate projection dots over the flattened (TB*S, D) rows.
    # (For small dim_k this avoids the unaligned lane slices a fused weight
    #  matrix would require; each dot accumulates in f32 on the MXU.)
    x2 = x.reshape(TB * S, D).astype(mxu_dtype)
    q = jnp.dot(x2, wq_ref[...].astype(mxu_dtype),
                preferred_element_type=jnp.float32).reshape(TB, S, -1)
    k = jnp.dot(x2, wk_ref[...].astype(mxu_dtype),
                preferred_element_type=jnp.float32).reshape(TB, S, -1)
    v = jnp.dot(x2, wv_ref[...].astype(mxu_dtype),
                preferred_element_type=jnp.float32).reshape(TB, S, dim_v)

    # Transposed scores: alpha_t[b, j, i] = K[b, j, :] . Q[b, i, :]
    # PyTorch softmax(alpha, dim=1) normalizes over the query index i for each
    # (b, j); with the transposed layout that is a *lane-axis* (last-dim)
    # reduction — the cheap native path (no sublane/XLU reductions).
    alpha_t = jnp.einsum("bjk,bik->bji", k.astype(mxu_dtype), q.astype(mxu_dtype),
                         preferred_element_type=jnp.float32)      # (TB, S_j, S_i)
    m = jnp.max(alpha_t, axis=-1, keepdims=True)
    e = jnp.exp(alpha_t - m)
    denom = jnp.sum(e, axis=-1, keepdims=True)
    inv = pl.reciprocal(denom, approx=True)          # EUP slot
    inv = inv * (2.0 - denom * inv)                  # one Newton step -> ~f32 exact
    p_t = e * inv                                    # p_t[b, j, i] = softmax prob

    # out[b, i, :] = sum_j p[b, i, j] * V[b, j, :]  ==  contract p_t over j.
    # MXU handles the "transposed LHS" contraction natively (no explicit transpose).
    out = jnp.einsum("bji,bjv->biv", p_t.astype(mxu_dtype), v.astype(mxu_dtype),
                     preferred_element_type=jnp.float32)          # (TB, S, Dv)

    # Two separate lane-dense stores; residual add done in the output dtype.
    out_ref[...] = out.astype(out_ref.dtype)
    feat_ref[...] = out.astype(feat_ref.dtype) + x


def _pick_block_b(B, S, D, K, Dv, itemsize, block_b):
    """Pick a batch tile TB that divides B (no padding), fits a conservative VMEM
    budget, and keeps >=2 grid steps so v7x's second TensorCore gets work."""
    if block_b is None:
        per_ex = (2 * S * D * itemsize            # x block (double-buffered)
                  + 2 * S * (Dv + D) * itemsize   # out + feat blocks (double-buffered)
                  + S * (2 * K + Dv) * 4          # q, k, v (f32)
                  + 3 * S * S * 4                 # alpha_t, e, p_t (f32)
                  + S * Dv * 4)                   # out accumulator (f32)
        budget = 24 * 1024 * 1024                 # conservative across v5e/v6e/v7x
        block_b = max(1, budget // max(per_ex, 1))
        if B >= 2:
            # Never collapse to grid=(1,): keep work for both TCs on v7x.
            block_b = min(block_b, max(1, B // 2))
    cap = max(1, min(block_b, B))
    tb = 1
    for cand in range(1, cap + 1):
        if B % cand == 0:
            tb = cand                              # largest divisor of B <= cap
    return tb


def attention_layer(inputs, wq, wk, wv, *, block_b=None, mxu_bf16=False):
    """inputs: (B, S, D); wq/wk: (K, D); wv: (Dv, D) in PyTorch (out, in) layout."""
    B, S, D = inputs.shape
    K = wq.shape[0]
    Dv = wv.shape[0]
    assert wq.shape == (K, D) and wk.shape == (K, D) and wv.shape == (Dv, D)
    assert Dv == D, "residual add (out + inputs) requires dim_v == input_dim"

    # Pre-transpose the weights to (in, out) so the kernel's dots are plain
    # row-major MXU matmuls.
    wq_t, wk_t, wv_t = wq.T, wk.T, wv.T            # (D, K), (D, K), (D, Dv)

    TB = _pick_block_b(B, S, D, K, Dv, jnp.dtype(inputs.dtype).itemsize, block_b)
    n_blk = B // TB                                 # TB divides B -> no padding

    kernel = functools.partial(attention_layer_kernel, mxu_bf16=mxu_bf16)
    # Note: weights have a constant index_map, so they are DMA'd only once even
    # though the default pipeline reserves two buffers for them (small footprint).
    out, feat = pl.pallas_call(
        kernel,
        out_shape=(jax.ShapeDtypeStruct((B, S, Dv), inputs.dtype),
                   jax.ShapeDtypeStruct((B, S, D), inputs.dtype)),
        grid=(n_blk,),
        in_specs=[
            pl.BlockSpec((TB, S, D), lambda b: (b, 0, 0)),
            pl.BlockSpec((D, K), lambda b: (0, 0)),
            pl.BlockSpec((D, K), lambda b: (0, 0)),
            pl.BlockSpec((D, Dv), lambda b: (0, 0)),
        ],
        out_specs=[
            pl.BlockSpec((TB, S, Dv), lambda b: (b, 0, 0)),
            pl.BlockSpec((TB, S, D), lambda b: (b, 0, 0)),
        ],
        compiler_params=pltpu.CompilerParams(
            dimension_semantics=("parallel",),      # on v7x, CORE_PARALLEL candidate
            vmem_limit_bytes=64 * 1024 * 1024,
        ),
    )(inputs, wq_t, wk_t, wv_t)
    return out, feat


def reference(x, wq, wk, wv):
    """Pure-JAX reference mirroring the PyTorch forward exactly."""
    q = jnp.einsum("bsd,kd->bsk", x, wq)
    k = jnp.einsum("bsd,kd->bsk", x, wk)
    v = jnp.einsum("bsd,vd->bsv", x, wv)
    alpha = jnp.einsum("bik,bjk->bij", q, k)
    alpha = jax.nn.softmax(alpha, axis=1)           # dim=1, as in the PyTorch module
    out = jnp.einsum("bij,bjv->biv", alpha, v)
    feature = out + x
    return out, feature


if __name__ == "__main__":
    # Small shapes consistent with the module: batch=8, seq=8, input_dim=32,
    # dim_k=16, dim_v=32 (== input_dim, required by the residual add).
    B, S, D, K, Dv = 8, 8, 32, 16, 32

    key = jax.random.PRNGKey(0)
    k0, k1, k2, k3 = jax.random.split(key, 4)
    x = jax.random.normal(k0, (B, S, D), jnp.float32)
    wq = jax.random.normal(k1, (K, D), jnp.float32) / (D ** 0.5)
    wk = jax.random.normal(k2, (K, D), jnp.float32) / (D ** 0.5)
    wv = jax.random.normal(k3, (Dv, D), jnp.float32) / (D ** 0.5)

    ref_out, ref_feat = reference(x, wq, wk, wv)

    # f32 MXU-operand path (default): tight check against the f32 reference.
    out, feature = attention_layer(x, wq, wk, wv)   # TB=4 -> grid=(2,)
    jax.block_until_ready((out, feature))
    assert jnp.allclose(out, ref_out, atol=2e-4, rtol=2e-4), "out mismatch (f32)"
    assert jnp.allclose(feature, ref_feat, atol=2e-4, rtol=2e-4), "feature mismatch (f32)"

    # bf16 MXU-operand path (fast path on real shapes): looser tolerance.
    out_bf, feat_bf = attention_layer(x, wq, wk, wv, mxu_bf16=True)
    jax.block_until_ready((out_bf, feat_bf))
    assert jnp.allclose(out_bf, ref_out, atol=5e-2, rtol=5e-2), "out mismatch (bf16)"
    assert jnp.allclose(feat_bf, ref_feat, atol=5e-2, rtol=5e-2), "feature mismatch (bf16)"

    print("KERNEL_OK")
</pallas_src>

<mosaic_0001>
module attributes {stable_mosaic.version = 11 : i64} {
  func.func @attention_layer_kernel(%arg0: i32, %arg1: memref<4x8x32xf32, #tpu.memory_space<vmem>>, %arg2: memref<32x16xf32, #tpu.memory_space<vmem>>, %arg3: memref<32x16xf32, #tpu.memory_space<vmem>>, %arg4: memref<32x32xf32, #tpu.memory_space<vmem>>, %arg5: memref<4x8x32xf32, #tpu.memory_space<vmem>>, %arg6: memref<4x8x32xf32, #tpu.memory_space<vmem>>) attributes {dimension_semantics = [#tpu.dimension_semantics<parallel>], iteration_bounds = array<i64: 2>, scalar_prefetch = 0 : i64, scratch_operands = 0 : i64, tpu.core_type = #tpu.core_type<tc>, window_params = [{transform_indices = @transform_0, window_bounds = array<i64: 4, 8, 32>}, {pipeline_mode = #tpu.pipeline_mode<synchronous>, transform_indices = @transform_1, window_bounds = array<i64: 32, 16>}, {pipeline_mode = #tpu.pipeline_mode<synchronous>, transform_indices = @transform_2, window_bounds = array<i64: 32, 16>}, {pipeline_mode = #tpu.pipeline_mode<synchronous>, transform_indices = @transform_3, window_bounds = array<i64: 32, 32>}, {transform_indices = @transform_4, window_bounds = array<i64: 4, 8, 32>}, {transform_indices = @transform_5, window_bounds = array<i64: 4, 8, 32>}]} {
    %c0 = arith.constant 0 : index
    %c0_0 = arith.constant 0 : index
    %c0_1 = arith.constant 0 : index
    %0 = vector.load %arg1[%c0, %c0_0, %c0_1] : memref<4x8x32xf32, #tpu.memory_space<vmem>>, vector<4x8x32xf32>
    %1 = vector.shape_cast %0 : vector<4x8x32xf32> to vector<32x32xf32>
    %c0_2 = arith.constant 0 : index
    %c0_3 = arith.constant 0 : index
    %2 = vector.load %arg2[%c0_2, %c0_3] : memref<32x16xf32, #tpu.memory_space<vmem>>, vector<32x16xf32>
    %cst = arith.constant dense<0.000000e+00> : vector<32x16xf32>
    %3 = tpu.matmul %1, %2, %cst {dimension_numbers = #tpu.dot_dimension_numbers<[1], [0], [0], [1], [0, 0, 1, 1], [], []>} : vector<32x32xf32>, vector<32x16xf32>, vector<32x16xf32> -> vector<32x16xf32>
    %4 = vector.shape_cast %3 : vector<32x16xf32> to vector<4x8x16xf32>
    %c0_4 = arith.constant 0 : index
    %c0_5 = arith.constant 0 : index
    %5 = vector.load %arg3[%c0_4, %c0_5] : memref<32x16xf32, #tpu.memory_space<vmem>>, vector<32x16xf32>
    %cst_6 = arith.constant dense<0.000000e+00> : vector<32x16xf32>
    %6 = tpu.matmul %1, %5, %cst_6 {dimension_numbers = #tpu.dot_dimension_numbers<[1], [0], [0], [1], [0, 0, 1, 1], [], []>} : vector<32x32xf32>, vector<32x16xf32>, vector<32x16xf32> -> vector<32x16xf32>
    %7 = vector.shape_cast %6 : vector<32x16xf32> to vector<4x8x16xf32>
    %c0_7 = arith.constant 0 : index
    %c0_8 = arith.constant 0 : index
    %8 = vector.load %arg4[%c0_7, %c0_8] : memref<32x32xf32, #tpu.memory_space<vmem>>, vector<32x32xf32>
    %cst_9 = arith.constant dense<0.000000e+00> : vector<32x32xf32>
    %9 = tpu.matmul %1, %8, %cst_9 {dimension_numbers = #tpu.dot_dimension_numbers<[1], [0], [0], [1], [0, 0, 1, 1], [], []>} : vector<32x32xf32>, vector<32x32xf32>, vector<32x32xf32> -> vector<32x32xf32>
    %10 = vector.shape_cast %9 : vector<32x32xf32> to vector<4x8x32xf32>
    "tpu.trace_start"() <{level = 10 : i32, message = "bjk,bik->bji"}> : () -> ()
    %cst_10 = arith.constant dense<0.000000e+00> : vector<4x8x8xf32>
    %11 = tpu.matmul %7, %4, %cst_10 {dimension_numbers = #tpu.dot_dimension_numbers<[2], [2], [1], [1], [0, 0, 0, 1, 1, 1], [0], [0]>} : vector<4x8x16xf32>, vector<4x8x16xf32>, vector<4x8x8xf32> -> vector<4x8x8xf32>
    "tpu.trace_stop"() : () -> ()
    %cst_11 = arith.constant dense<0xFF800000> : vector<4x8xf32>
    %12 = vector.multi_reduction <maximumf>, %11, %cst_11 [2] : vector<4x8x8xf32> to vector<4x8xf32>
    %13 = vector.shape_cast %12 : vector<4x8xf32> to vector<4x8x1xf32>
    %14 = vector.broadcast %13 : vector<4x8x1xf32> to vector<4x8x8xf32>
    %15 = arith.subf %11, %14 : vector<4x8x8xf32>
    %16 = math.exp %15 : vector<4x8x8xf32>
    %cst_12 = arith.constant dense<0.000000e+00> : vector<4x8xf32>
    %17 = vector.multi_reduction <add>, %16, %cst_12 [2] : vector<4x8x8xf32> to vector<4x8xf32>
    %18 = vector.shape_cast %17 : vector<4x8xf32> to vector<4x8x1xf32>
    %19 = tpu.reciprocal %18 {approx = true} : vector<4x8x1xf32> -> vector<4x8x1xf32>
    %20 = arith.mulf %18, %19 : vector<4x8x1xf32>
    %cst_13 = arith.constant 2.000000e+00 : f32
    %21 = vector.broadcast %cst_13 : f32 to vector<4x8x1xf32>
    %22 = arith.subf %21, %20 : vector<4x8x1xf32>
    %23 = arith.mulf %19, %22 : vector<4x8x1xf32>
    %24 = vector.broadcast %23 : vector<4x8x1xf32> to vector<4x8x8xf32>
    %25 = arith.mulf %16, %24 : vector<4x8x8xf32>
    "tpu.trace_start"() <{level = 10 : i32, message = "bji,bjv->biv"}> : () -> ()
    %cst_14 = arith.constant dense<0.000000e+00> : vector<4x8x32xf32>
    %26 = tpu.matmul %25, %10, %cst_14 {dimension_numbers = #tpu.dot_dimension_numbers<[1], [1], [2], [2], [0, 0, 0, 2, 1, 2], [0], [0]>} : vector<4x8x8xf32>, vector<4x8x32xf32>, vector<4x8x32xf32> -> vector<4x8x32xf32>
    "tpu.trace_stop"() : () -> ()
    %c0_15 = arith.constant 0 : index
    %c0_16 = arith.constant 0 : index
    %c0_17 = arith.constant 0 : index
    %27 = vector.load %arg5[%c0_15, %c0_16, %c0_17] : memref<4x8x32xf32, #tpu.memory_space<vmem>>, vector<4x8x32xf32>
    tpu.vector_store %arg5[%c0_15, %c0_16, %c0_17], %26 {strides = array<i32>} : memref<4x8x32xf32, #tpu.memory_space<vmem>>, vector<4x8x32xf32>,
    %28 = arith.addf %26, %0 : vector<4x8x32xf32>
    %c0_18 = arith.constant 0 : index
    %c0_19 = arith.constant 0 : index
    %c0_20 = arith.constant 0 : index
    %29 = vector.load %arg6[%c0_18, %c0_19, %c0_20] : memref<4x8x32xf32, #tpu.memory_space<vmem>>, vector<4x8x32xf32>
    tpu.vector_store %arg6[%c0_18, %c0_19, %c0_20], %28 {strides = array<i32>} : memref<4x8x32xf32, #tpu.memory_space<vmem>>, vector<4x8x32xf32>,
    return
  }
  func.func @transform_0(%arg0: i32) -> (i32, i32, i32) {
    %c0_i32 = arith.constant 0 : i32
    %c0_i32_0 = arith.constant 0 : i32
    %c0_i32_1 = arith.constant 0 : i32
    return %arg0, %c0_i32, %c0_i32_0 : i32, i32, i32
  }
  func.func @transform_1(%arg0: i32) -> (i32, i32) {
    %c0_i32 = arith.constant 0 : i32
    %c0_i32_0 = arith.constant 0 : i32
    %c0_i32_1 = arith.constant 0 : i32
    return %c0_i32, %c0_i32_0 : i32, i32
  }
  func.func @transform_2(%arg0: i32) -> (i32, i32) {
    %c0_i32 = arith.constant 0 : i32
    %c0_i32_0 = arith.constant 0 : i32
    %c0_i32_1 = arith.constant 0 : i32
    return %c0_i32, %c0_i32_0 : i32, i32
  }
  func.func @transform_3(%arg0: i32) -> (i32, i32) {
    %c0_i32 = arith.constant 0 : i32
    %c0_i32_0 = arith.constant 0 : i32
    %c0_i32_1 = arith.constant 0 : i32
    return %c0_i32, %c0_i32_0 : i32, i32
  }
  func.func @transform_4(%arg0: i32) -> (i32, i32, i32) {
    %c0_i32 = arith.constant 0 : i32
    %c0_i32_0 = arith.constant 0 : i32
    %c0_i32_1 = arith.constant 0 : i32
    return %arg0, %c0_i32, %c0_i32_0 : i32, i32, i32
  }
  func.func @transform_5(%arg0: i32) -> (i32, i32, i32) {
    %c0_i32 = arith.constant 0 : i32
    %c0_i32_0 = arith.constant 0 : i32
    %c0_i32_1 = arith.constant 0 : i32
    return %arg0, %c0_i32, %c0_i32_0 : i32, i32, i32
  }
}

</mosaic_0001>

<llo_original>
// kernel: tpu_custom_call.1
$region0: #{tpu_custom_call.1}
  #allocation0 [shape = 'u32[]', space=smem, size = 0x4, offset = 0x4, fixed_abs, tag = 'smem constant byte address 0x4 - core index']
  #allocation1 [shape = 'u32[144,128]{1,0:T(1,128)}', space=vmem, size = 0x12000, scoped, tag = 'internal scratch']
  %s0 = inlined_call_operand.hbm [shape: f32[8,8,32], index: 0, kind: input, shape index: {}]
  %s1 = inlined_call_operand.hbm [shape: f32[32,16], index: 1, kind: input, shape index: {}]
  %s2 = inlined_call_operand.hbm [shape: f32[32,16], index: 2, kind: input, shape index: {}]
  %s3 = inlined_call_operand.hbm [shape: f32[32,32], index: 3, kind: input, shape index: {}]
  %s4 = inlined_call_operand.hbm [shape: f32[8,8,32], index: 4, kind: output, shape index: {0}]
  %s5 = inlined_call_operand.hbm [shape: f32[8,8,32], index: 5, kind: output, shape index: {1}]
  %6 = xla_tuple %s4, %s5
  %s7 = sld [smem:[#allocation0]]
  $region73: #{tpu_custom_call.1} parent=0
    _
  %s9 = ssub.s32 1, %s7
  %s10 = scalar_select 0, %s9, %s7
  $region1: #{tpu_custom_call.1} parent=0
    #allocation2 [shape = 'u8[32768]{0}', space=vmem, size = 0x8000, scoped, tag = 'input window, operand 0']
    #allocation3 [shape = 's32[2]{0}', space=sflag, size = 0x8, scoped, tag = 'scoped memory for tpu_custom_call.1']
    #allocation4 [shape = 's32[2]{0}', space=sflag, size = 0x8, scoped, tag = 'scoped memory for tpu_custom_call.1']
    #allocation5 [shape = 'u8[16384]{0}', space=vmem, size = 0x4000, scoped, tag = 'input window, operand 1, single buffered']
    #allocation6 [shape = 's32[1]{0}', space=sflag, size = 0x4, scoped, tag = 'scoped memory for tpu_custom_call.1']
    #allocation7 [shape = 'u8[16384]{0}', space=vmem, size = 0x4000, scoped, tag = 'input window, operand 2, single buffered']
    #allocation8 [shape = 'u8[16384]{0}', space=vmem, size = 0x4000, scoped, tag = 'input window, operand 3, single buffered']
    #allocation9 [shape = 's32[1]{0}', space=sflag, size = 0x4, scoped, tag = 'scoped memory for tpu_custom_call.1']
    #allocation10 [shape = 'u8[32768]{0}', space=vmem, size = 0x8000, scoped, tag = 'output window, operand 0']
    #allocation11 [shape = 'u8[32768]{0}', space=vmem, size = 0x8000, scoped, tag = 'output window, operand 1']
    #allocation12 [shape = 's32[2]{0}', space=sflag, size = 0x8, scoped, tag = 'scoped memory for tpu_custom_call.1']
    %11 = vsyncpa [#allocation3], 0
    %s12 = scalar_lea.sflag [#allocation3], 1
    %13 = vsyncpa %s12, 0
    %14 = vsyncpa [#allocation6], 0
    %15 = vsyncpa [#allocation9], 0
    %16 = vsyncpa [#allocation4], 0
    %s17 = scalar_lea.sflag [#allocation4], 1
    %18 = vsyncpa %s17, 0
    %19 = vsyncpa [#allocation12], 0
    %s20 = scalar_lea.sflag [#allocation12], 1
    %21 = vsyncpa %s20, 0
    loop: start=0, step=1, limit=4
    $region2: #{tpu_custom_call.1} parent=1 // loop_pre_header
      _
    $region3: #{tpu_custom_call.1} parent=1 // loop_header
      %s23 = sphi 0, %s27
      %p24 = scmp.ge.s32.totalorder %s23, 4
      %s33 = sphi 0, %s35
      %s36 = sphi 0, %s33
      %s37 = sphi 0, %s36
      %s53 = sphi 0, %s37
      %s57 = sphi 0, %s57
      %s59 = sphi 0, %s57
      %s60 = sphi 0, %s59
      %s74 = sphi 0, %s60
      %s78 = sphi 0, %s78
      %s80 = sphi 0, %s78
      %s81 = sphi 0, %s80
      %s95 = sphi 0, %s81
      %s99 = sphi 0, %s99
      %s101 = sphi 0, %s99
      %s102 = sphi 0, %s101
      %s116 = sphi 0, %s102
      %s122 = sphi 0, %s124
      %s125 = sphi 0, %s122
      %s126 = sphi 0, %s125
      %s142 = sphi 0, %s126
      %s148 = sphi 0, %s150
      %s151 = sphi 0, %s148
      %s152 = sphi 0, %s151
      %s168 = sphi 0, %s152
    $region4: #{tpu_custom_call.1} parent=1 // loop_header_branch
      %26 = sbr.rel (%p24) target = $region8
    $region5: #{tpu_custom_call.1} parent=1 // loop_body
      %s28 = ssub.s32 %s23, 1
      %s29 = ssub.s32 %s23, 2
      %s30 = sadd.s32 %s23, 1
      %s31 = ssub.s32 %s23, %s30
      %p32 = scmp.eq.s32.totalorder %s31, 0
      %s34 = sadd.s32 %s33, 1
      %s35 = scalar_select %p32, %s33, %s34
      %p38 = pneg %p32
      %p39 = scmp.eq.s32.totalorder %s23, 1
      %p40 = por %p38, %p39
      %p41 = scmp.ne.s32.totalorder %s33, %s36
      %p42 = scmp.eq.s32.totalorder %s23, 0
      %p43 = por %p41, %p42
      %p44 = scmp.ne.s32.totalorder %s33, %s36
      %p45 = scmp.eq.s32.totalorder %s28, 1
      %p46 = por %p44, %p45
      %p47 = scmp.ne.s32.totalorder %s36, %s37
      %p48 = scmp.eq.s32.totalorder %s28, 0
      %p49 = por %p47, %p48
      %p50 = scmp.ne.s32.totalorder %s36, %s37
      %p51 = scmp.eq.s32.totalorder %s29, 1
      %p52 = por %p50, %p51
      %p54 = scmp.ne.s32.totalorder %s37, %s53
      %p55 = scmp.eq.s32.totalorder %s29, 0
      %p56 = por %p54, %p55
      %s58 = sadd.s32 %s57, 1
      %p61 = scmp.eq.s32.totalorder %s23, 1
      %p62 = scmp.ne.s32.totalorder %s57, %s59
      %p63 = scmp.eq.s32.totalorder %s23, 0
      %p64 = por %p62, %p63
      %p65 = scmp.ne.s32.totalorder %s57, %s59
      %p66 = scmp.eq.s32.totalorder %s28, 1
      %p67 = por %p65, %p66
      %p68 = scmp.ne.s32.totalorder %s59, %s60
      %p69 = scmp.eq.s32.totalorder %s28, 0
      %p70 = por %p68, %p69
      %p71 = scmp.ne.s32.totalorder %s59, %s60
      %p72 = scmp.eq.s32.totalorder %s29, 1
      %p73 = por %p71, %p72
      %p75 = scmp.ne.s32.totalorder %s60, %s74
      %p76 = scmp.eq.s32.totalorder %s29, 0
      %p77 = por %p75, %p76
      %s79 = sadd.s32 %s78, 1
      %p82 = scmp.eq.s32.totalorder %s23, 1
      %p83 = scmp.ne.s32.totalorder %s78, %s80
      %p84 = scmp.eq.s32.totalorder %s23, 0
      %p85 = por %p83, %p84
      %p86 = scmp.ne.s32.totalorder %s78, %s80
      %p87 = scmp.eq.s32.totalorder %s28, 1
      %p88 = por %p86, %p87
      %p89 = scmp.ne.s32.totalorder %s80, %s81
      %p90 = scmp.eq.s32.totalorder %s28, 0
      %p91 = por %p89, %p90
      %p92 = scmp.ne.s32.totalorder %s80, %s81
      %p93 = scmp.eq.s32.totalorder %s29, 1
      %p94 = por %p92, %p93
      %p96 = scmp.ne.s32.totalorder %s81, %s95
      %p97 = scmp.eq.s32.totalorder %s29, 0
      %p98 = por %p96, %p97
      %s100 = sadd.s32 %s99, 1
      %p103 = scmp.eq.s32.totalorder %s23, 1
      %p104 = scmp.ne.s32.totalorder %s99, %s101
      %p105 = scmp.eq.s32.totalorder %s23, 0
      %p106 = por %p104, %p105
      %p107 = scmp.ne.s32.totalorder %s99, %s101
      %p108 = scmp.eq.s32.totalorder %s28, 1
      %p109 = por %p107, %p108
      %p110 = scmp.ne.s32.totalorder %s101, %s102
      %p111 = scmp.eq.s32.totalorder %s28, 0
      %p112 = por %p110, %p111
      %p113 = scmp.ne.s32.totalorder %s101, %s102
      %p114 = scmp.eq.s32.totalorder %s29, 1
      %p115 = por %p113, %p114
      %p117 = scmp.ne.s32.totalorder %s102, %s116
      %p118 = scmp.eq.s32.totalorder %s29, 0
      %p119 = por %p117, %p118
      %s120 = ssub.s32 %s23, %s30
      %p121 = scmp.eq.s32.totalorder %s120, 0
      %s123 = sadd.s32 %s122, 1
      %s124 = scalar_select %p121, %s122, %s123
      %p127 = pneg %p121
      %p128 = scmp.eq.s32.totalorder %s23, 1
      %p129 = por %p127, %p128
      %p130 = scmp.ne.s32.totalorder %s122, %s125
      %p131 = scmp.eq.s32.totalorder %s23, 0
      %p132 = por %p130, %p131
      %p133 = scmp.ne.s32.totalorder %s122, %s125
      %p134 = scmp.eq.s32.totalorder %s28, 1
      %p135 = por %p133, %p134
      %p136 = scmp.ne.s32.totalorder %s125, %s126
      %p137 = scmp.eq.s32.totalorder %s28, 0
      %p138 = por %p136, %p137
      %p139 = scmp.ne.s32.totalorder %s125, %s126
      %p140 = scmp.eq.s32.totalorder %s29, 1
      %p141 = por %p139, %p140
      %p143 = scmp.ne.s32.totalorder %s126, %s142
      %p144 = scmp.eq.s32.totalorder %s29, 0
      %p145 = por %p143, %p144
      %s146 = ssub.s32 %s23, %s30
      %p147 = scmp.eq.s32.totalorder %s146, 0
      %s149 = sadd.s32 %s148, 1
      %s150 = scalar_select %p147, %s148, %s149
      %p153 = pneg %p147
      %p154 = scmp.eq.s32.totalorder %s23, 1
      %p155 = por %p153, %p154
      %p156 = scmp.ne.s32.totalorder %s148, %s151
      %p157 = scmp.eq.s32.totalorder %s23, 0
      %p158 = por %p156, %p157
      %p159 = scmp.ne.s32.totalorder %s148, %s151
      %p160 = scmp.eq.s32.totalorder %s28, 1
      %p161 = por %p159, %p160
      %p162 = scmp.ne.s32.totalorder %s151, %s152
      %p163 = scmp.eq.s32.totalorder %s28, 0
      %p164 = por %p162, %p163
      %p165 = scmp.ne.s32.totalorder %s151, %s152
      %p166 = scmp.eq.s32.totalorder %s29, 1
      %p167 = por %p165, %p166
      %p169 = scmp.ne.s32.totalorder %s152, %s168
      %p170 = scmp.eq.s32.totalorder %s29, 0
      %p171 = por %p169, %p170
      %p172 = scmp.le.s32.totalorder 1, %s23
      %p173 = scmp.lt.s32.totalorder %s23, 3
      %p174 = pnand %p172, %p173
      %p175 = pneg %p174
      // Predicated region
      $region9: #{tpu_custom_call.1} parent=5 // pred_check
        _
      $region10: #{tpu_custom_call.1} parent=5 // pred_check_branch
        %177 = sbr.rel (%p174) target = $region12
      $region11: #{tpu_custom_call.1} parent=5 // pred_region
        %s178 = ssub.s32 %s23, 1
        // Predicated region
        $region13: #{tpu_custom_call.1} parent=11 // pred_check
          %p179 = pneg %p70
        $region14: #{tpu_custom_call.1} parent=11 // pred_check_branch
          %181 = sbr.rel (%p179) target = $region16
        $region15: #{tpu_custom_call.1} parent=11 // pred_region
          %s183 = ssub.s32 512, 512
          %184 = vsyncadd [#allocation6], %s183
          %s185 = sshll.u32 [#allocation5], 4
          %s186 = int_to_ptr.vmem [resolvable:$true] %s185
          %191 = dma.hbm_to_vmem [thread:$0]  %s1, 512, %s186, [#allocation6], 128, 128, 8
        $region16: #{tpu_custom_call.1} parent=11 // pred_fallthru
          _
        // Predicated region
        $region17: #{tpu_custom_call.1} parent=11 // pred_check
          %p192 = pneg %p91
        $region18: #{tpu_custom_call.1} parent=11 // pred_check_branch
          %194 = sbr.rel (%p192) target = $region20
        $region19: #{tpu_custom_call.1} parent=11 // pred_region
          %s196 = ssub.s32 512, 512
          %197 = vsyncadd [#allocation6], %s196
          %s198 = sshll.u32 [#allocation7], 4
          %s199 = int_to_ptr.vmem [resolvable:$true] %s198
          %204 = dma.hbm_to_vmem [thread:$0]  %s2, 512, %s199, [#allocation6], 128, 128, 8
        $region20: #{tpu_custom_call.1} parent=11 // pred_fallthru
          _
        // Predicated region
        $region21: #{tpu_custom_call.1} parent=11 // pred_check
          %p205 = pneg %p112
        $region22: #{tpu_custom_call.1} parent=11 // pred_check_branch
          %207 = sbr.rel (%p205) target = $region24
        $region23: #{tpu_custom_call.1} parent=11 // pred_region
          %s209 = ssub.s32 512, 512
          %210 = vsyncadd [#allocation9], %s209
          %s211 = sshll.u32 [#allocation8], 4
          %s212 = int_to_ptr.vmem [resolvable:$true] %s211
          %217 = dma.hbm_to_vmem [thread:$0]  %s3, 512, %s212, [#allocation9], 128, 128, 8
        $region24: #{tpu_custom_call.1} parent=11 // pred_fallthru
          _
      $region12: #{tpu_custom_call.1} parent=5 // pred_fallthru
        _
      %p218 = scmp.lt.s32.totalorder %s23, 2
      // Predicated region
      $region25: #{tpu_custom_call.1} parent=5 // pred_check
        %p219 = pneg %p218
      $region26: #{tpu_custom_call.1} parent=5 // pred_check_branch
        %221 = sbr.rel (%p219) target = $region28
      $region27: #{tpu_custom_call.1} parent=5 // pred_region
        // Predicated region
        $region29: #{tpu_custom_call.1} parent=27 // pred_check
          %p222 = pneg %p43
        $region30: #{tpu_custom_call.1} parent=27 // pred_check_branch
          %224 = sbr.rel (%p222) target = $region32
        $region31: #{tpu_custom_call.1} parent=27 // pred_region
          %s225 = sand.u32 %s33, 1
          %s226 = scalar_lea.sflag [#allocation3], %s225
          %s227 = sand.u32 %s33, 1
          %s228 = smul.addr %s227, 32
          %s229 = scalar_lea.vmem [#allocation2], %s228
          %s230 = smul.u32 4, %s23
          %s232 = ssub.s32 512, 512
          %233 = vsyncadd %s226, %s232
          %s234 = smul.addr %s230, 128
          %s235 = scalar_lea.hbm %s0, %s234
          %s236 = sshll.u32 %s229, 4
          %s237 = int_to_ptr.vmem [resolvable:$true] %s236
          %242 = dma.hbm_to_vmem [thread:$0]  %s235, 512, %s237, %s226, 128, 128, 8
        $region32: #{tpu_custom_call.1} parent=27 // pred_fallthru
          _
      $region28: #{tpu_custom_call.1} parent=5 // pred_fallthru
        _
      %p243 = scmp.le.s32.totalorder 1, %s23
      %p244 = scmp.lt.s32.totalorder %s23, 3
      %p245 = pnand %p243, %p244
      %p246 = pneg %p245
      // Predicated region
      $region33: #{tpu_custom_call.1} parent=5 // pred_check
        _
      $region34: #{tpu_custom_call.1} parent=5 // pred_check_branch
        %248 = sbr.rel (%p245) target = $region36
      $region35: #{tpu_custom_call.1} parent=5 // pred_region
        %s249 = ssub.s32 %s23, 1
        %s250 = sand.u32 %s36, 1
        %s251 = scalar_lea.sflag [#allocation3], %s250
        %s252 = sand.u32 %s36, 1
        %s253 = smul.addr %s252, 32
        %s254 = scalar_lea.vmem [#allocation2], %s253
        // Predicated region
        $region37: #{tpu_custom_call.1} parent=35 // pred_check
          %p255 = pneg %p49
        $region38: #{tpu_custom_call.1} parent=35 // pred_check_branch
          %257 = sbr.rel (%p255) target = $region40
        $region39: #{tpu_custom_call.1} parent=35 // pred_region
          %258 = dma.done %s251, 512
        $region40: #{tpu_custom_call.1} parent=35 // pred_fallthru
          _
        // Predicated region
        $region41: #{tpu_custom_call.1} parent=35 // pred_check
          %p259 = pneg %p70
        $region42: #{tpu_custom_call.1} parent=35 // pred_check_branch
          %261 = sbr.rel (%p259) target = $region44
        $region43: #{tpu_custom_call.1} parent=35 // pred_region
          %262 = dma.done [#allocation6], 512
        $region44: #{tpu_custom_call.1} parent=35 // pred_fallthru
          _
        // Predicated region
        $region45: #{tpu_custom_call.1} parent=35 // pred_check
          %p263 = pneg %p91
        $region46: #{tpu_custom_call.1} parent=35 // pred_check_branch
          %265 = sbr.rel (%p263) target = $region48
        $region47: #{tpu_custom_call.1} parent=35 // pred_region
          %266 = dma.done [#allocation6], 512
        $region48: #{tpu_custom_call.1} parent=35 // pred_fallthru
          _
        // Predicated region
        $region49: #{tpu_custom_call.1} parent=35 // pred_check
          %p267 = pneg %p112
        $region50: #{tpu_custom_call.1} parent=35 // pred_check_branch
          %269 = sbr.rel (%p267) target = $region52
        $region51: #{tpu_custom_call.1} parent=35 // pred_region
          %270 = dma.done [#allocation9], 512
        $region52: #{tpu_custom_call.1} parent=35 // pred_fallthru
          _
        %s271 = sand.u32 %s36, 1
        %s272 = scalar_lea.sflag [#allocation3], %s271
        %s273 = sand.u32 %s36, 1
        %s274 = smul.addr %s273, 32
        %s275 = scalar_lea.vmem [#allocation2], %s274
        %p276 = pneg %p49
        %p277 = pneg %p46
        %p278 = pneg %p70
        %p279 = pneg %p67
        %p280 = pneg %p91
        %p281 = pneg %p88
        %p282 = pneg %p112
        %p283 = pneg %p109
        %p284 = pneg %p138
        %p285 = pneg %p135
        %s286 = sand.u32 %s125, 1
        %s287 = scalar_lea.sflag [#allocation4], %s286
        %s288 = sand.u32 %s125, 1
        %s289 = smul.addr %s288, 32
        %s290 = scalar_lea.vmem [#allocation10], %s289
        %p291 = pneg %p164
        %p292 = pneg %p161
        %s293 = sand.u32 %s151, 1
        %s294 = scalar_lea.sflag [#allocation12], %s293
        %s295 = sand.u32 %s151, 1
        %s296 = smul.addr %s295, 32
        %s297 = scalar_lea.vmem [#allocation11], %s296
        %s298 = smul.u32 4, %s28
        %s299 = smul.u32 4, %s28
        %s300 = smul.u32 4, %s28
        %v301 = vld [vmem:[%s254] sm:$0xff]
        %v302 = vld [vmem:[%s254 + $0x8] sm:$0xff]
        %v303 = vld [vmem:[%s254 + $0x10] sm:$0xff]
        %v304 = vld [vmem:[%s254 + $0x18] sm:$0xff]
        %v305 = vld [vmem:[#allocation5] sm:$0xff]
        %v306 = vld [vmem:[#allocation5 + $0x8] sm:$0xff]
        %v307 = vld [vmem:[#allocation5 + $0x10] sm:$0xff]
        %v308 = vld [vmem:[#allocation5 + $0x18] sm:$0xff]
        %vm309 = vcmask 261120
        %v311 = vsel %vm309, %v301, 0
        %v314 = vsel %vm309, %v302, 0
        %v317 = vsel %vm309, %v303, 0
        %v320 = vsel %vm309, %v304, 0
        %322 = vmatprep.subr.mxu0 0.0
        %323 = vmatpush1.msra.mxu0 %v305
        %324 = vmatprep.subr.mxu0 0.0
        %325 = vmatpush1.msra.mxu0 %v306
        %326 = vmatprep.subr.mxu0 0.0
        %327 = vmatpush1.msra.mxu0 %v307
        %328 = vmatprep.subr.mxu0 0.0
        %329 = vmatpush1.msra.mxu0 %v308
        %330 = vmatprep.subr.mxu0 0.0
        %331 = vmatpush1.msra.mxu0 0.0
        %332 = vmatprep.subr.mxu0 0.0
        %333 = vmatpush1.msra.mxu0 0.0
        %334 = vmatprep.subr.mxu0 0.0
        %335 = vmatpush1.msra.mxu0 0.0
        %336 = vmatprep.subr.mxu0 0.0
        %337 = vmatpush1.msra.mxu0 0.0
        %338 = vmatprep.subr.mxu0 0.0
        %339 = vmatpush1.msra.mxu0 0.0
        %340 = vmatprep.subr.mxu0 0.0
        %341 = vmatpush1.msra.mxu0 0.0
        %342 = vmatprep.subr.mxu0 0.0
        %343 = vmatpush1.msra.mxu0 0.0
        %344 = vmatprep.subr.mxu0 0.0
        %345 = vmatpush1.msra.mxu0 0.0
        %346 = vmatprep.subr.mxu0 0.0
        %347 = vmatpush1.msra.mxu0 0.0
        %348 = vmatprep.subr.mxu0 0.0
        %349 = vmatpush1.msra.mxu0 0.0
        %350 = vmatprep.subr.mxu0 0.0
        %351 = vmatpush1.msra.mxu0 0.0
        %352 = vmatprep.subr.mxu0 0.0
        %353 = vmatpush1.msra.mxu0 0.0
        %354 = vmatprep.subr.mxu0 0.0
        %355 = vmatpush1.msra.mxu0 0.0
        %356 = vmatprep.subr.mxu0 0.0
        %357 = vmatpush1.msra.mxu0 0.0
        %358 = vmatprep.subr.mxu0 0.0
        %359 = vmatpush1.msra.mxu0 0.0
        %360 = vmatprep.subr.mxu0 0.0
        %361 = vmatpush1.msra.mxu0 0.0
        %362 = vmatprep.subr.mxu0 0.0
        %363 = vmatpush1.msra.mxu0 0.0
        %364 = vmatprep.subr.mxu0 0.0
        %365 = vmatpush1.msra.mxu0 0.0
        %366 = vmatprep.subr.mxu0 0.0
        %367 = vmatpush1.msra.mxu0 0.0
        %368 = vmatprep.subr.mxu0 0.0
        %369 = vmatpush1.msra.mxu0 0.0
        %370 = vmatprep.subr.mxu0 0.0
        %371 = vmatpush1.msra.mxu0 0.0
        %372 = vmatprep.subr.mxu0 0.0
        %373 = vmatpush1.msra.mxu0 0.0
        %374 = vmatprep.subr.mxu0 0.0
        %375 = vmatpush1.msra.mxu0 0.0
        %376 = vmatprep.subr.mxu0 0.0
        %377 = vmatpush1.msra.mxu0 0.0
        %378 = vmatprep.subr.mxu0 0.0
        %379 = vmatpush1.msra.mxu0 0.0
        %380 = vmatprep.subr.mxu0 0.0
        %381 = vmatpush1.msra.mxu0 0.0
        %382 = vmatprep.subr.mxu0 0.0
        %383 = vmatpush1.msra.mxu0 0.0
        %384 = vmatprep.subr.mxu0 0.0
        %385 = vmatpush1.msra.mxu0 0.0
        %386 = vmatprep.mubr.f32.mxu0 0.0
        %387 = vmatmul.mubr.f32.gmra.mrb[0].mxu0 %v311
        %v388 = vpop.f32.mrb[0].mxu0
        %v389 = vadd.f32 0.0, %v388
        %v390 = vpop.f32.mrb[0].mxu0
        %391 = vmatprep.mubr.f32.mxu0 0.0
        %392 = vmatmul.mubr.f32.gmra.mrb[0].mxu0 %v314
        %v393 = vpop.f32.mrb[0].mxu0
        %v394 = vadd.f32 0.0, %v393
        %v395 = vpop.f32.mrb[0].mxu0
        %396 = vmatprep.mubr.f32.mxu0 0.0
        %397 = vmatmul.mubr.f32.gmra.mrb[0].mxu0 %v317
        %v398 = vpop.f32.mrb[0].mxu0
        %v399 = vadd.f32 0.0, %v398
        %v400 = vpop.f32.mrb[0].mxu0
        %401 = vmatprep.mubr.f32.mxu0 0.0
        %402 = vmatmul.mubr.f32.gmra.mrb[0].mxu0 %v320
        %v403 = vpop.f32.mrb[0].mxu0
        %v404 = vadd.f32 0.0, %v403
        %v405 = vpop.f32.mrb[0].mxu0
        %406 = vdwg.mxu0
        %v407 = vld [vmem:[#allocation7] sm:$0xff]
        %v408 = vld [vmem:[#allocation7 + $0x8] sm:$0xff]
        %v409 = vld [vmem:[#allocation7 + $0x10] sm:$0xff]
        %v410 = vld [vmem:[#allocation7 + $0x18] sm:$0xff]
        %411 = vmatprep.subr.mxu0 0.0
        %412 = vmatpush1.msra.mxu0 %v407
        %413 = vmatprep.subr.mxu0 0.0
        %414 = vmatpush1.msra.mxu0 %v408
        %415 = vmatprep.subr.mxu0 0.0
        %416 = vmatpush1.msra.mxu0 %v409
        %417 = vmatprep.subr.mxu0 0.0
        %418 = vmatpush1.msra.mxu0 %v410
        %419 = vmatprep.subr.mxu0 0.0
        %420 = vmatpush1.msra.mxu0 0.0
        %421 = vmatprep.subr.mxu0 0.0
        %422 = vmatpush1.msra.mxu0 0.0
        %423 = vmatprep.subr.mxu0 0.0
        %424 = vmatpush1.msra.mxu0 0.0
        %425 = vmatprep.subr.mxu0 0.0
        %426 = vmatpush1.msra.mxu0 0.0
        %427 = vmatprep.subr.mxu0 0.0
        %428 = vmatpush1.msra.mxu0 0.0
        %429 = vmatprep.subr.mxu0 0.0
        %430 = vmatpush1.msra.mxu0 0.0
        %431 = vmatprep.subr.mxu0 0.0
        %432 = vmatpush1.msra.mxu0 0.0
        %433 = vmatprep.subr.mxu0 0.0
        %434 = vmatpush1.msra.mxu0 0.0
        %435 = vmatprep.subr.mxu0 0.0
        %436 = vmatpush1.msra.mxu0 0.0
        %437 = vmatprep.subr.mxu0 0.0
        %438 = vmatpush1.msra.mxu0 0.0
        %439 = vmatprep.subr.mxu0 0.0
        %440 = vmatpush1.msra.mxu0 0.0
        %441 = vmatprep.subr.mxu0 0.0
        %442 = vmatpush1.msra.mxu0 0.0
        %443 = vmatprep.subr.mxu0 0.0
        %444 = vmatpush1.msra.mxu0 0.0
        %445 = vmatprep.subr.mxu0 0.0
        %446 = vmatpush1.msra.mxu0 0.0
        %447 = vmatprep.subr.mxu0 0.0
        %448 = vmatpush1.msra.mxu0 0.0
        %449 = vmatprep.subr.mxu0 0.0
        %450 = vmatpush1.msra.mxu0 0.0
        %451 = vmatprep.subr.mxu0 0.0
        %452 = vmatpush1.msra.mxu0 0.0
        %453 = vmatprep.subr.mxu0 0.0
        %454 = vmatpush1.msra.mxu0 0.0
        %455 = vmatprep.subr.mxu0 0.0
        %456 = vmatpush1.msra.mxu0 0.0
        %457 = vmatprep.subr.mxu0 0.0
        %458 = vmatpush1.msra.mxu0 0.0
        %459 = vmatprep.subr.mxu0 0.0
        %460 = vmatpush1.msra.mxu0 0.0
        %461 = vmatprep.subr.mxu0 0.0
        %462 = vmatpush1.msra.mxu0 0.0
        %463 = vmatprep.subr.mxu0 0.0
        %464 = vmatpush1.msra.mxu0 0.0
        %465 = vmatprep.subr.mxu0 0.0
        %466 = vmatpush1.msra.mxu0 0.0
        %467 = vmatprep.subr.mxu0 0.0
        %468 = vmatpush1.msra.mxu0 0.0
        %469 = vmatprep.subr.mxu0 0.0
        %470 = vmatpush1.msra.mxu0 0.0
        %471 = vmatprep.subr.mxu0 0.0
        %472 = vmatpush1.msra.mxu0 0.0
        %473 = vmatprep.subr.mxu0 0.0
        %474 = vmatpush1.msra.mxu0 0.0
        %475 = vmatprep.mubr.f32.mxu0 0.0
        %476 = vmatmul.mubr.f32.gmra.mrb[0].mxu0 %v311
        %v477 = vpop.f32.mrb[0].mxu0
        %v478 = vadd.f32 0.0, %v477
        %v479 = vpop.f32.mrb[0].mxu0
        %480 = vmatprep.mubr.f32.mxu0 0.0
        %481 = vmatmul.mubr.f32.gmra.mrb[0].mxu0 %v314
        %v482 = vpop.f32.mrb[0].mxu0
        %v483 = vadd.f32 0.0, %v482
        %v484 = vpop.f32.mrb[0].mxu0
        %485 = vmatprep.mubr.f32.mxu0 0.0
        %486 = vmatmul.mubr.f32.gmra.mrb[0].mxu0 %v317
        %v487 = vpop.f32.mrb[0].mxu0
        %v488 = vadd.f32 0.0, %v487
        %v489 = vpop.f32.mrb[0].mxu0
        %490 = vmatprep.mubr.f32.mxu0 0.0
        %491 = vmatmul.mubr.f32.gmra.mrb[0].mxu0 %v320
        %v492 = vpop.f32.mrb[0].mxu0
        %v493 = vadd.f32 0.0, %v492
        %v494 = vpop.f32.mrb[0].mxu0
        %495 = vdwg.mxu0
        %v496 = vld [vmem:[#allocation8] sm:$0xff]
        %v497 = vld [vmem:[#allocation8 + $0x8] sm:$0xff]
        %v498 = vld [vmem:[#allocation8 + $0x10] sm:$0xff]
        %v499 = vld [vmem:[#allocation8 + $0x18] sm:$0xff]
        %500 = vmatprep.subr.mxu0 0.0
        %501 = vmatpush1.msra.mxu0 %v496
        %502 = vmatprep.subr.mxu0 0.0
        %503 = vmatpush1.msra.mxu0 %v497
        %504 = vmatprep.subr.mxu0 0.0
        %505 = vmatpush1.msra.mxu0 %v498
        %506 = vmatprep.subr.mxu0 0.0
        %507 = vmatpush1.msra.mxu0 %v499
        %508 = vmatprep.subr.mxu0 0.0
        %509 = vmatpush1.msra.mxu0 0.0
        %510 = vmatprep.subr.mxu0 0.0
        %511 = vmatpush1.msra.mxu0 0.0
        %512 = vmatprep.subr.mxu0 0.0
        %513 = vmatpush1.msra.mxu0 0.0
        %514 = vmatprep.subr.mxu0 0.0
        %515 = vmatpush1.msra.mxu0 0.0
        %516 = vmatprep.subr.mxu0 0.0
        %517 = vmatpush1.msra.mxu0 0.0
        %518 = vmatprep.subr.mxu0 0.0
        %519 = vmatpush1.msra.mxu0 0.0
        %520 = vmatprep.subr.mxu0 0.0
        %521 = vmatpush1.msra.mxu0 0.0
        %522 = vmatprep.subr.mxu0 0.0
        %523 = vmatpush1.msra.mxu0 0.0
        %524 = vmatprep.subr.mxu0 0.0
        %525 = vmatpush1.msra.mxu0 0.0
        %526 = vmatprep.subr.mxu0 0.0
        %527 = vmatpush1.msra.mxu0 0.0
        %528 = vmatprep.subr.mxu0 0.0
        %529 = vmatpush1.msra.mxu0 0.0
        %530 = vmatprep.subr.mxu0 0.0
        %531 = vmatpush1.msra.mxu0 0.0
        %532 = vmatprep.subr.mxu0 0.0
        %533 = vmatpush1.msra.mxu0 0.0
        %534 = vmatprep.subr.mxu0 0.0
        %535 = vmatpush1.msra.mxu0 0.0
        %536 = vmatprep.subr.mxu0 0.0
        %537 = vmatpush1.msra.mxu0 0.0
        %538 = vmatprep.subr.mxu0 0.0
        %539 = vmatpush1.msra.mxu0 0.0
        %540 = vmatprep.subr.mxu0 0.0
        %541 = vmatpush1.msra.mxu0 0.0
        %542 = vmatprep.subr.mxu0 0.0
        %543 = vmatpush1.msra.mxu0 0.0
        %544 = vmatprep.subr.mxu0 0.0
        %545 = vmatpush1.msra.mxu0 0.0
        %546 = vmatprep.subr.mxu0 0.0
        %547 = vmatpush1.msra.mxu0 0.0
        %548 = vmatprep.subr.mxu0 0.0
        %549 = vmatpush1.msra.mxu0 0.0
        %550 = vmatprep.subr.mxu0 0.0
        %551 = vmatpush1.msra.mxu0 0.0
        %552 = vmatprep.subr.mxu0 0.0
        %553 = vmatpush1.msra.mxu0 0.0
        %554 = vmatprep.subr.mxu0 0.0
        %555 = vmatpush1.msra.mxu0 0.0
        %556 = vmatprep.subr.mxu0 0.0
        %557 = vmatpush1.msra.mxu0 0.0
        %558 = vmatprep.subr.mxu0 0.0
        %559 = vmatpush1.msra.mxu0 0.0
        %560 = vmatprep.subr.mxu0 0.0
        %561 = vmatpush1.msra.mxu0 0.0
        %562 = vmatprep.subr.mxu0 0.0
        %563 = vmatpush1.msra.mxu0 0.0
        %564 = vmatprep.mubr.f32.mxu0 0.0
        %565 = vmatmul.mubr.f32.gmra.mrb[0].mxu0 %v311
        %v566 = vpop.f32.mrb[0].mxu0
        %v567 = vadd.f32 0.0, %v566
        %v568 = vpop.f32.mrb[0].mxu0
        %569 = vmatprep.mubr.f32.mxu0 0.0
        %570 = vmatmul.mubr.f32.gmra.mrb[0].mxu0 %v314
        %v571 = vpop.f32.mrb[0].mxu0
        %v572 = vadd.f32 0.0, %v571
        %v573 = vpop.f32.mrb[0].mxu0
        %574 = vmatprep.mubr.f32.mxu0 0.0
        %575 = vmatmul.mubr.f32.gmra.mrb[0].mxu0 %v317
        %v576 = vpop.f32.mrb[0].mxu0
        %v577 = vadd.f32 0.0, %v576
        %v578 = vpop.f32.mrb[0].mxu0
        %579 = vmatprep.mubr.f32.mxu0 0.0
        %580 = vmatmul.mubr.f32.gmra.mrb[0].mxu0 %v320
        %v581 = vpop.f32.mrb[0].mxu0
        %v582 = vadd.f32 0.0, %v581
        %v583 = vpop.f32.mrb[0].mxu0
        %584 = vdwg.mxu0
        %vm585 = vcmask 130048
        %v587 = vsel %vm585, %v478, 0
        %v590 = vsel %vm585, %v389, 0
        %592 = vmatprep.subr.mxu0 0.0
        %593 = vmatpush1.xpose.msra.mxu0 %v590
        %594 = vmatprep.subr.mxu0 0.0
        %595 = vmatpush1.xpose.msra.mxu0 0.0
        %596 = vmatprep.subr.mxu0 0.0
        %597 = vmatpush1.xpose.msra.mxu0 0.0
        %598 = vmatprep.subr.mxu0 0.0
        %599 = vmatpush1.xpose.msra.mxu0 0.0
        %600 = vmatprep.subr.mxu0 0.0
        %601 = vmatpush1.xpose.msra.mxu0 0.0
        %602 = vmatprep.subr.mxu0 0.0
        %603 = vmatpush1.xpose.msra.mxu0 0.0
        %604 = vmatprep.subr.mxu0 0.0
        %605 = vmatpush1.xpose.msra.mxu0 0.0
        %606 = vmatprep.subr.mxu0 0.0
        %607 = vmatpush1.xpose.msra.mxu0 0.0
        %608 = vmatprep.subr.mxu0 0.0
        %609 = vmatpush1.xpose.msra.mxu0 0.0
        %610 = vmatprep.subr.mxu0 0.0
        %611 = vmatpush1.xpose.msra.mxu0 0.0
        %612 = vmatprep.subr.mxu0 0.0
        %613 = vmatpush1.xpose.msra.mxu0 0.0
        %614 = vmatprep.subr.mxu0 0.0
        %615 = vmatpush1.xpose.msra.mxu0 0.0
        %616 = vmatprep.subr.mxu0 0.0
        %617 = vmatpush1.xpose.msra.mxu0 0.0
        %618 = vmatprep.subr.mxu0 0.0
        %619 = vmatpush1.xpose.msra.mxu0 0.0
        %620 = vmatprep.subr.mxu0 0.0
        %621 = vmatpush1.xpose.msra.mxu0 0.0
        %622 = vmatprep.subr.mxu0 0.0
        %623 = vmatpush1.xpose.msra.mxu0 0.0
        %624 = vmatprep.subr.mxu0 0.0
        %625 = vmatpush1.xpose.msra.mxu0 0.0
        %626 = vmatprep.subr.mxu0 0.0
        %627 = vmatpush1.xpose.msra.mxu0 0.0
        %628 = vmatprep.subr.mxu0 0.0
        %629 = vmatpush1.xpose.msra.mxu0 0.0
        %630 = vmatprep.subr.mxu0 0.0
        %631 = vmatpush1.xpose.msra.mxu0 0.0
        %632 = vmatprep.subr.mxu0 0.0
        %633 = vmatpush1.xpose.msra.mxu0 0.0
        %634 = vmatprep.subr.mxu0 0.0
        %635 = vmatpush1.xpose.msra.mxu0 0.0
        %636 = vmatprep.subr.mxu0 0.0
        %637 = vmatpush1.xpose.msra.mxu0 0.0
        %638 = vmatprep.subr.mxu0 0.0
        %639 = vmatpush1.xpose.msra.mxu0 0.0
        %640 = vmatprep.subr.mxu0 0.0
        %641 = vmatpush1.xpose.msra.mxu0 0.0
        %642 = vmatprep.subr.mxu0 0.0
        %643 = vmatpush1.xpose.msra.mxu0 0.0
        %644 = vmatprep.subr.mxu0 0.0
        %645 = vmatpush1.xpose.msra.mxu0 0.0
        %646 = vmatprep.subr.mxu0 0.0
        %647 = vmatpush1.xpose.msra.mxu0 0.0
        %648 = vmatprep.subr.mxu0 0.0
        %649 = vmatpush1.xpose.msra.mxu0 0.0
        %650 = vmatprep.subr.mxu0 0.0
        %651 = vmatpush1.xpose.msra.mxu0 0.0
        %652 = vmatprep.subr.mxu0 0.0
        %653 = vmatpush1.xpose.msra.mxu0 0.0
        %654 = vmatprep.subr.mxu0 0.0
        %655 = vmatpush1.xpose.msra.mxu0 0.0
        %656 = vmatprep.mubr.f32.mxu0 0.0
        %657 = vmatmul.mubr.f32.gmra.mrb[0].mxu0 %v587
        %v658 = vpop.f32.mrb[0].mxu0
        %v659 = vadd.f32 0.0, %v658
        %v660 = vpop.f32.mrb[0].mxu0
        %661 = vdwg.mxu0
        %v663 = vsel %vm585, %v483, 0
        %v666 = vsel %vm585, %v394, 0
        %668 = vmatprep.subr.mxu0 0.0
        %669 = vmatpush1.xpose.msra.mxu0 %v666
        %670 = vmatprep.subr.mxu0 0.0
        %671 = vmatpush1.xpose.msra.mxu0 0.0
        %672 = vmatprep.subr.mxu0 0.0
        %673 = vmatpush1.xpose.msra.mxu0 0.0
        %674 = vmatprep.subr.mxu0 0.0
        %675 = vmatpush1.xpose.msra.mxu0 0.0
        %676 = vmatprep.subr.mxu0 0.0
        %677 = vmatpush1.xpose.msra.mxu0 0.0
        %678 = vmatprep.subr.mxu0 0.0
        %679 = vmatpush1.xpose.msra.mxu0 0.0
        %680 = vmatprep.subr.mxu0 0.0
        %681 = vmatpush1.xpose.msra.mxu0 0.0
        %682 = vmatprep.subr.mxu0 0.0
        %683 = vmatpush1.xpose.msra.mxu0 0.0
        %684 = vmatprep.subr.mxu0 0.0
        %685 = vmatpush1.xpose.msra.mxu0 0.0
        %686 = vmatprep.subr.mxu0 0.0
        %687 = vmatpush1.xpose.msra.mxu0 0.0
        %688 = vmatprep.subr.mxu0 0.0
        %689 = vmatpush1.xpose.msra.mxu0 0.0
        %690 = vmatprep.subr.mxu0 0.0
        %691 = vmatpush1.xpose.msra.mxu0 0.0
        %692 = vmatprep.subr.mxu0 0.0
        %693 = vmatpush1.xpose.msra.mxu0 0.0
        %694 = vmatprep.subr.mxu0 0.0
        %695 = vmatpush1.xpose.msra.mxu0 0.0
        %696 = vmatprep.subr.mxu0 0.0
        %697 = vmatpush1.xpose.msra.mxu0 0.0
        %698 = vmatprep.subr.mxu0 0.0
        %699 = vmatpush1.xpose.msra.mxu0 0.0
        %700 = vmatprep.subr.mxu0 0.0
        %701 = vmatpush1.xpose.msra.mxu0 0.0
        %702 = vmatprep.subr.mxu0 0.0
        %703 = vmatpush1.xpose.msra.mxu0 0.0
        %704 = vmatprep.subr.mxu0 0.0
        %705 = vmatpush1.xpose.msra.mxu0 0.0
        %706 = vmatprep.subr.mxu0 0.0
        %707 = vmatpush1.xpose.msra.mxu0 0.0
        %708 = vmatprep.subr.mxu0 0.0
        %709 = vmatpush1.xpose.msra.mxu0 0.0
        %710 = vmatprep.subr.mxu0 0.0
        %711 = vmatpush1.xpose.msra.mxu0 0.0
        %712 = vmatprep.subr.mxu0 0.0
        %713 = vmatpush1.xpose.msra.mxu0 0.0
        %714 = vmatprep.subr.mxu0 0.0
        %715 = vmatpush1.xpose.msra.mxu0 0.0
        %716 = vmatprep.subr.mxu0 0.0
        %717 = vmatpush1.xpose.msra.mxu0 0.0
        %718 = vmatprep.subr.mxu0 0.0
        %719 = vmatpush1.xpose.msra.mxu0 0.0
        %720 = vmatprep.subr.mxu0 0.0
        %721 = vmatpush1.xpose.msra.mxu0 0.0
        %722 = vmatprep.subr.mxu0 0.0
        %723 = vmatpush1.xpose.msra.mxu0 0.0
        %724 = vmatprep.subr.mxu0 0.0
        %725 = vmatpush1.xpose.msra.mxu0 0.0
        %726 = vmatprep.subr.mxu0 0.0
        %727 = vmatpush1.xpose.msra.mxu0 0.0
        %728 = vmatprep.subr.mxu0 0.0
        %729 = vmatpush1.xpose.msra.mxu0 0.0
        %730 = vmatprep.subr.mxu0 0.0
        %731 = vmatpush1.xpose.msra.mxu0 0.0
        %732 = vmatprep.mubr.f32.mxu0 0.0
        %733 = vmatmul.mubr.f32.gmra.mrb[0].mxu0 %v663
        %v734 = vpop.f32.mrb[0].mxu0
        %v735 = vadd.f32 0.0, %v734
        %v736 = vpop.f32.mrb[0].mxu0
        %737 = vdwg.mxu0
        %v739 = vsel %vm585, %v488, 0
        %v742 = vsel %vm585, %v399, 0
        %744 = vmatprep.subr.mxu0 0.0
        %745 = vmatpush1.xpose.msra.mxu0 %v742
        %746 = vmatprep.subr.mxu0 0.0
        %747 = vmatpush1.xpose.msra.mxu0 0.0
        %748 = vmatprep.subr.mxu0 0.0
        %749 = vmatpush1.xpose.msra.mxu0 0.0
        %750 = vmatprep.subr.mxu0 0.0
        %751 = vmatpush1.xpose.msra.mxu0 0.0
        %752 = vmatprep.subr.mxu0 0.0
        %753 = vmatpush1.xpose.msra.mxu0 0.0
        %754 = vmatprep.subr.mxu0 0.0
        %755 = vmatpush1.xpose.msra.mxu0 0.0
        %756 = vmatprep.subr.mxu0 0.0
        %757 = vmatpush1.xpose.msra.mxu0 0.0
        %758 = vmatprep.subr.mxu0 0.0
        %759 = vmatpush1.xpose.msra.mxu0 0.0
        %760 = vmatprep.subr.mxu0 0.0
        %761 = vmatpush1.xpose.msra.mxu0 0.0
        %762 = vmatprep.subr.mxu0 0.0
        %763 = vmatpush1.xpose.msra.mxu0 0.0
        %764 = vmatprep.subr.mxu0 0.0
        %765 = vmatpush1.xpose.msra.mxu0 0.0
        %766 = vmatprep.subr.mxu0 0.0
        %767 = vmatpush1.xpose.msra.mxu0 0.0
        %768 = vmatprep.subr.mxu0 0.0
        %769 = vmatpush1.xpose.msra.mxu0 0.0
        %770 = vmatprep.subr.mxu0 0.0
        %771 = vmatpush1.xpose.msra.mxu0 0.0
        %772 = vmatprep.subr.mxu0 0.0
        %773 = vmatpush1.xpose.msra.mxu0 0.0
        %774 = vmatprep.subr.mxu0 0.0
        %775 = vmatpush1.xpose.msra.mxu0 0.0
        %776 = vmatprep.subr.mxu0 0.0
        %777 = vmatpush1.xpose.msra.mxu0 0.0
        %778 = vmatprep.subr.mxu0 0.0
        %779 = vmatpush1.xpose.msra.mxu0 0.0
        %780 = vmatprep.subr.mxu0 0.0
        %781 = vmatpush1.xpose.msra.mxu0 0.0
        %782 = vmatprep.subr.mxu0 0.0
        %783 = vmatpush1.xpose.msra.mxu0 0.0
        %784 = vmatprep.subr.mxu0 0.0
        %785 = vmatpush1.xpose.msra.mxu0 0.0
        %786 = vmatprep.subr.mxu0 0.0
        %787 = vmatpush1.xpose.msra.mxu0 0.0
        %788 = vmatprep.subr.mxu0 0.0
        %789 = vmatpush1.xpose.msra.mxu0 0.0
        %790 = vmatprep.subr.mxu0 0.0
        %791 = vmatpush1.xpose.msra.mxu0 0.0
        %792 = vmatprep.subr.mxu0 0.0
        %793 = vmatpush1.xpose.msra.mxu0 0.0
        %794 = vmatprep.subr.mxu0 0.0
        %795 = vmatpush1.xpose.msra.mxu0 0.0
        %796 = vmatprep.subr.mxu0 0.0
        %797 = vmatpush1.xpose.msra.mxu0 0.0
        %798 = vmatprep.subr.mxu0 0.0
        %799 = vmatpush1.xpose.msra.mxu0 0.0
        %800 = vmatprep.subr.mxu0 0.0
        %801 = vmatpush1.xpose.msra.mxu0 0.0
        %802 = vmatprep.subr.mxu0 0.0
        %803 = vmatpush1.xpose.msra.mxu0 0.0
        %804 = vmatprep.subr.mxu0 0.0
        %805 = vmatpush1.xpose.msra.mxu0 0.0
        %806 = vmatprep.subr.mxu0 0.0
        %807 = vmatpush1.xpose.msra.mxu0 0.0
        %808 = vmatprep.mubr.f32.mxu0 0.0
        %809 = vmatmul.mubr.f32.gmra.mrb[0].mxu0 %v739
        %v810 = vpop.f32.mrb[0].mxu0
        %v811 = vadd.f32 0.0, %v810
        %v812 = vpop.f32.mrb[0].mxu0
        %813 = vdwg.mxu0
        %v815 = vsel %vm585, %v493, 0
        %v818 = vsel %vm585, %v404, 0
        %820 = vmatprep.subr.mxu0 0.0
        %821 = vmatpush1.xpose.msra.mxu0 %v818
        %822 = vmatprep.subr.mxu0 0.0
        %823 = vmatpush1.xpose.msra.mxu0 0.0
        %824 = vmatprep.subr.mxu0 0.0
        %825 = vmatpush1.xpose.msra.mxu0 0.0
        %826 = vmatprep.subr.mxu0 0.0
        %827 = vmatpush1.xpose.msra.mxu0 0.0
        %828 = vmatprep.subr.mxu0 0.0
        %829 = vmatpush1.xpose.msra.mxu0 0.0
        %830 = vmatprep.subr.mxu0 0.0
        %831 = vmatpush1.xpose.msra.mxu0 0.0
        %832 = vmatprep.subr.mxu0 0.0
        %833 = vmatpush1.xpose.msra.mxu0 0.0
        %834 = vmatprep.subr.mxu0 0.0
        %835 = vmatpush1.xpose.msra.mxu0 0.0
        %836 = vmatprep.subr.mxu0 0.0
        %837 = vmatpush1.xpose.msra.mxu0 0.0
        %838 = vmatprep.subr.mxu0 0.0
        %839 = vmatpush1.xpose.msra.mxu0 0.0
        %840 = vmatprep.subr.mxu0 0.0
        %841 = vmatpush1.xpose.msra.mxu0 0.0
        %842 = vmatprep.subr.mxu0 0.0
        %843 = vmatpush1.xpose.msra.mxu0 0.0
        %844 = vmatprep.subr.mxu0 0.0
        %845 = vmatpush1.xpose.msra.mxu0 0.0
        %846 = vmatprep.subr.mxu0 0.0
        %847 = vmatpush1.xpose.msra.mxu0 0.0
        %848 = vmatprep.subr.mxu0 0.0
        %849 = vmatpush1.xpose.msra.mxu0 0.0
        %850 = vmatprep.subr.mxu0 0.0
        %851 = vmatpush1.xpose.msra.mxu0 0.0
        %852 = vmatprep.subr.mxu0 0.0
        %853 = vmatpush1.xpose.msra.mxu0 0.0
        %854 = vmatprep.subr.mxu0 0.0
        %855 = vmatpush1.xpose.msra.mxu0 0.0
        %856 = vmatprep.subr.mxu0 0.0
        %857 = vmatpush1.xpose.msra.mxu0 0.0
        %858 = vmatprep.subr.mxu0 0.0
        %859 = vmatpush1.xpose.msra.mxu0 0.0
        %860 = vmatprep.subr.mxu0 0.0
        %861 = vmatpush1.xpose.msra.mxu0 0.0
        %862 = vmatprep.subr.mxu0 0.0
        %863 = vmatpush1.xpose.msra.mxu0 0.0
        %864 = vmatprep.subr.mxu0 0.0
        %865 = vmatpush1.xpose.msra.mxu0 0.0
        %866 = vmatprep.subr.mxu0 0.0
        %867 = vmatpush1.xpose.msra.mxu0 0.0
        %868 = vmatprep.subr.mxu0 0.0
        %869 = vmatpush1.xpose.msra.mxu0 0.0
        %870 = vmatprep.subr.mxu0 0.0
        %871 = vmatpush1.xpose.msra.mxu0 0.0
        %872 = vmatprep.subr.mxu0 0.0
        %873 = vmatpush1.xpose.msra.mxu0 0.0
        %874 = vmatprep.subr.mxu0 0.0
        %875 = vmatpush1.xpose.msra.mxu0 0.0
        %876 = vmatprep.subr.mxu0 0.0
        %877 = vmatpush1.xpose.msra.mxu0 0.0
        %878 = vmatprep.subr.mxu0 0.0
        %879 = vmatpush1.xpose.msra.mxu0 0.0
        %880 = vmatprep.subr.mxu0 0.0
        %881 = vmatpush1.xpose.msra.mxu0 0.0
        %882 = vmatprep.subr.mxu0 0.0
        %883 = vmatpush1.xpose.msra.mxu0 0.0
        %884 = vmatprep.mubr.f32.mxu0 0.0
        %885 = vmatmul.mubr.f32.gmra.mrb[0].mxu0 %v815
        %v886 = vpop.f32.mrb[0].mxu0
        %v887 = vadd.f32 0.0, %v886
        %v888 = vpop.f32.mrb[0].mxu0
        %889 = vdwg.mxu0
        %vm890 = vcmask 64512
        %v891 = vsel %vm890, %v659, -inf
        %892 = vmax.xlane.f32.xlu0 %v891
        %v893 = vpop.xlane.xlu0 %892
        %v894 = vsel %vm890, %v735, -inf
        %895 = vmax.xlane.f32.xlu0 %v894
        %v896 = vpop.xlane.xlu0 %895
        %v897 = vsel %vm890, %v811, -inf
        %898 = vmax.xlane.f32.xlu0 %v897
        %v899 = vpop.xlane.xlu0 %898
        %v900 = vsel %vm890, %v887, -inf
        %901 = vmax.xlane.f32.xlu0 %v900
        %v902 = vpop.xlane.xlu0 %901
        %v903 = vsub.f32 %v659, %v893
        %v904 = vsub.f32 %v735, %v896
        %v905 = vsub.f32 %v811, %v899
        %v906 = vsub.f32 %v887, %v902
        %v907 = vmul.f32 %v903, 1.442695
        %v908 = vpow.pop %v907
        %v909 = vmul.f32 %v904, 1.442695
        %v910 = vpow.pop %v909
        %v911 = vmul.f32 %v905, 1.442695
        %v912 = vpow.pop %v911
        %v913 = vmul.f32 %v906, 1.442695
        %v914 = vpow.pop %v913
        %v915 = vsel %vm890, %v908, 0.0
        %916 = vadd.xlane.f32.xlu0 %v915
        %v917 = vpop.xlane.xlu0 %916
        %v918 = vsel %vm890, %v910, 0.0
        %919 = vadd.xlane.f32.xlu0 %v918
        %v920 = vpop.xlane.xlu0 %919
        %v921 = vsel %vm890, %v912, 0.0
        %922 = vadd.xlane.f32.xlu0 %v921
        %v923 = vpop.xlane.xlu0 %922
        %v924 = vsel %vm890, %v914, 0.0
        %925 = vadd.xlane.f32.xlu0 %v924
        %v926 = vpop.xlane.xlu0 %925
        %v927 = vrcp.pop %v917
        %v928 = vrcp.pop %v920
        %v929 = vrcp.pop %v923
        %v930 = vrcp.pop %v926
        %v931 = vmul.f32 %v917, %v927
        %v932 = vmul.f32 %v920, %v928
        %v933 = vmul.f32 %v923, %v929
        %v934 = vmul.f32 %v926, %v930
        %v935 = vsub.f32 2.0, %v931
        %v936 = vsub.f32 2.0, %v932
        %v937 = vsub.f32 2.0, %v933
        %v938 = vsub.f32 2.0, %v934
        %v939 = vmul.f32 %v927, %v935
        %v940 = vmul.f32 %v928, %v936
        %v941 = vmul.f32 %v929, %v937
        %v942 = vmul.f32 %v930, %v938
        %v943 = vmul.f32 %v908, %v939
        %v944 = vmul.f32 %v910, %v940
        %v945 = vmul.f32 %v912, %v941
        %v946 = vmul.f32 %v914, %v942
        %947 = vxpose.xlu0.b32.start [1/16] %v943, 128
        %948 = vxpose.xlu0.b32.cont [2/16] 0.0, 128
        %949 = vxpose.xlu0.b32.cont [3/16] 0.0, 128
        %950 = vxpose.xlu0.b32.cont [4/16] 0.0, 128
        %951 = vxpose.xlu0.b32.cont [5/16] 0.0, 128
        %952 = vxpose.xlu0.b32.cont [6/16] 0.0, 128
        %953 = vxpose.xlu0.b32.cont [7/16] 0.0, 128
        %954 = vxpose.xlu0.b32.cont [8/16] 0.0, 128
        %955 = vxpose.xlu0.b32.cont [9/16] 0.0, 128
        %956 = vxpose.xlu0.b32.cont [10/16] 0.0, 128
        %957 = vxpose.xlu0.b32.cont [11/16] 0.0, 128
        %958 = vxpose.xlu0.b32.cont [12/16] 0.0, 128
        %959 = vxpose.xlu0.b32.cont [13/16] 0.0, 128
        %960 = vxpose.xlu0.b32.cont [14/16] 0.0, 128
        %961 = vxpose.xlu0.b32.cont [15/16] 0.0, 128
        %962 = vxpose.xlu0.b32.end [16/16] 0.0, 128
        %v963 = vpop.trf.xlu0
        %v964 = vpop.trf.xlu0
        %v965 = vpop.trf.xlu0
        %v966 = vpop.trf.xlu0
        %v967 = vpop.trf.xlu0
        %v968 = vpop.trf.xlu0
        %v969 = vpop.trf.xlu0
        %v970 = vpop.trf.xlu0
        %v971 = vpop.trf.xlu0
        %v972 = vpop.trf.xlu0
        %v973 = vpop.trf.xlu0
        %v974 = vpop.trf.xlu0
        %v975 = vpop.trf.xlu0
        %v976 = vpop.trf.xlu0
        %v977 = vpop.trf.xlu0
        %v978 = vpop.trf.xlu0
        %v980 = vsel %vm890, %v963, 0
        %982 = vmatprep.subr.mxu0 0.0
        %983 = vmatpush1.msra.mxu0 %v567
        %984 = vmatprep.subr.mxu0 0.0
        %985 = vmatpush1.msra.mxu0 0.0
        %986 = vmatprep.subr.mxu0 0.0
        %987 = vmatpush1.msra.mxu0 0.0
        %988 = vmatprep.subr.mxu0 0.0
        %989 = vmatpush1.msra.mxu0 0.0
        %990 = vmatprep.subr.mxu0 0.0
        %991 = vmatpush1.msra.mxu0 0.0
        %992 = vmatprep.subr.mxu0 0.0
        %993 = vmatpush1.msra.mxu0 0.0
        %994 = vmatprep.subr.mxu0 0.0
        %995 = vmatpush1.msra.mxu0 0.0
        %996 = vmatprep.subr.mxu0 0.0
        %997 = vmatpush1.msra.mxu0 0.0
        %998 = vmatprep.subr.mxu0 0.0
        %999 = vmatpush1.msra.mxu0 0.0
        %1000 = vmatprep.subr.mxu0 0.0
        %1001 = vmatpush1.msra.mxu0 0.0
        %1002 = vmatprep.subr.mxu0 0.0
        %1003 = vmatpush1.msra.mxu0 0.0
        %1004 = vmatprep.subr.mxu0 0.0
        %1005 = vmatpush1.msra.mxu0 0.0
        %1006 = vmatprep.subr.mxu0 0.0
        %1007 = vmatpush1.msra.mxu0 0.0
        %1008 = vmatprep.subr.mxu0 0.0
        %1009 = vmatpush1.msra.mxu0 0.0
        %1010 = vmatprep.subr.mxu0 0.0
        %1011 = vmatpush1.msra.mxu0 0.0
        %1012 = vmatprep.subr.mxu0 0.0
        %1013 = vmatpush1.msra.mxu0 0.0
        %1014 = vmatprep.subr.mxu0 0.0
        %1015 = vmatpush1.msra.mxu0 0.0
        %1016 = vmatprep.subr.mxu0 0.0
        %1017 = vmatpush1.msra.mxu0 0.0
        %1018 = vmatprep.subr.mxu0 0.0
        %1019 = vmatpush1.msra.mxu0 0.0
        %1020 = vmatprep.subr.mxu0 0.0
        %1021 = vmatpush1.msra.mxu0 0.0
        %1022 = vmatprep.subr.mxu0 0.0
        %1023 = vmatpush1.msra.mxu0 0.0
        %1024 = vmatprep.subr.mxu0 0.0
        %1025 = vmatpush1.msra.mxu0 0.0
        %1026 = vmatprep.subr.mxu0 0.0
        %1027 = vmatpush1.msra.mxu0 0.0
        %1028 = vmatprep.subr.mxu0 0.0
        %1029 = vmatpush1.msra.mxu0 0.0
        %1030 = vmatprep.subr.mxu0 0.0
        %1031 = vmatpush1.msra.mxu0 0.0
        %1032 = vmatprep.subr.mxu0 0.0
        %1033 = vmatpush1.msra.mxu0 0.0
        %1034 = vmatprep.subr.mxu0 0.0
        %1035 = vmatpush1.msra.mxu0 0.0
        %1036 = vmatprep.subr.mxu0 0.0
        %1037 = vmatpush1.msra.mxu0 0.0
        %1038 = vmatprep.subr.mxu0 0.0
        %1039 = vmatpush1.msra.mxu0 0.0
        %1040 = vmatprep.subr.mxu0 0.0
        %1041 = vmatpush1.msra.mxu0 0.0
        %1042 = vmatprep.subr.mxu0 0.0
        %1043 = vmatpush1.msra.mxu0 0.0
        %1044 = vmatprep.subr.mxu0 0.0
        %1045 = vmatpush1.msra.mxu0 0.0
        %1046 = vmatprep.mubr.f32.mxu0 0.0
        %1047 = vmatmul.mubr.f32.gmra.mrb[0].mxu0 %v980
        %v1048 = vpop.f32.mrb[0].mxu0
        %v1049 = vadd.f32 0.0, %v1048
        %v1050 = vpop.f32.mrb[0].mxu0
        %1051 = vdwg.mxu0
        %1052 = vxpose.xlu0.b32.start [1/16] %v944, 128
        %1053 = vxpose.xlu0.b32.cont [2/16] 0.0, 128
        %1054 = vxpose.xlu0.b32.cont [3/16] 0.0, 128
        %1055 = vxpose.xlu0.b32.cont [4/16] 0.0, 128
        %1056 = vxpose.xlu0.b32.cont [5/16] 0.0, 128
        %1057 = vxpose.xlu0.b32.cont [6/16] 0.0, 128
        %1058 = vxpose.xlu0.b32.cont [7/16] 0.0, 128
        %1059 = vxpose.xlu0.b32.cont [8/16] 0.0, 128
        %1060 = vxpose.xlu0.b32.cont [9/16] 0.0, 128
        %1061 = vxpose.xlu0.b32.cont [10/16] 0.0, 128
        %1062 = vxpose.xlu0.b32.cont [11/16] 0.0, 128
        %1063 = vxpose.xlu0.b32.cont [12/16] 0.0, 128
        %1064 = vxpose.xlu0.b32.cont [13/16] 0.0, 128
        %1065 = vxpose.xlu0.b32.cont [14/16] 0.0, 128
        %1066 = vxpose.xlu0.b32.cont [15/16] 0.0, 128
        %1067 = vxpose.xlu0.b32.end [16/16] 0.0, 128
        %v1068 = vpop.trf.xlu0
        %v1069 = vpop.trf.xlu0
        %v1070 = vpop.trf.xlu0
        %v1071 = vpop.trf.xlu0
        %v1072 = vpop.trf.xlu0
        %v1073 = vpop.trf.xlu0
        %v1074 = vpop.trf.xlu0
        %v1075 = vpop.trf.xlu0
        %v1076 = vpop.trf.xlu0
        %v1077 = vpop.trf.xlu0
        %v1078 = vpop.trf.xlu0
        %v1079 = vpop.trf.xlu0
        %v1080 = vpop.trf.xlu0
        %v1081 = vpop.trf.xlu0
        %v1082 = vpop.trf.xlu0
        %v1083 = vpop.trf.xlu0
        %v1085 = vsel %vm890, %v1068, 0
        %1087 = vmatprep.subr.mxu0 0.0
        %1088 = vmatpush1.msra.mxu0 %v572
        %1089 = vmatprep.subr.mxu0 0.0
        %1090 = vmatpush1.msra.mxu0 0.0
        %1091 = vmatprep.subr.mxu0 0.0
        %1092 = vmatpush1.msra.mxu0 0.0
        %1093 = vmatprep.subr.mxu0 0.0
        %1094 = vmatpush1.msra.mxu0 0.0
        %1095 = vmatprep.subr.mxu0 0.0
        %1096 = vmatpush1.msra.mxu0 0.0
        %1097 = vmatprep.subr.mxu0 0.0
        %1098 = vmatpush1.msra.mxu0 0.0
        %1099 = vmatprep.subr.mxu0 0.0
        %1100 = vmatpush1.msra.mxu0 0.0
        %1101 = vmatprep.subr.mxu0 0.0
        %1102 = vmatpush1.msra.mxu0 0.0
        %1103 = vmatprep.subr.mxu0 0.0
        %1104 = vmatpush1.msra.mxu0 0.0
        %1105 = vmatprep.subr.mxu0 0.0
        %1106 = vmatpush1.msra.mxu0 0.0
        %1107 = vmatprep.subr.mxu0 0.0
        %1108 = vmatpush1.msra.mxu0 0.0
        %1109 = vmatprep.subr.mxu0 0.0
        %1110 = vmatpush1.msra.mxu0 0.0
        %1111 = vmatprep.subr.mxu0 0.0
        %1112 = vmatpush1.msra.mxu0 0.0
        %1113 = vmatprep.subr.mxu0 0.0
        %1114 = vmatpush1.msra.mxu0 0.0
        %1115 = vmatprep.subr.mxu0 0.0
        %1116 = vmatpush1.msra.mxu0 0.0
        %1117 = vmatprep.subr.mxu0 0.0
        %1118 = vmatpush1.msra.mxu0 0.0
        %1119 = vmatprep.subr.mxu0 0.0
        %1120 = vmatpush1.msra.mxu0 0.0
        %1121 = vmatprep.subr.mxu0 0.0
        %1122 = vmatpush1.msra.mxu0 0.0
        %1123 = vmatprep.subr.mxu0 0.0
        %1124 = vmatpush1.msra.mxu0 0.0
        %1125 = vmatprep.subr.mxu0 0.0
        %1126 = vmatpush1.msra.mxu0 0.0
        %1127 = vmatprep.subr.mxu0 0.0
        %1128 = vmatpush1.msra.mxu0 0.0
        %1129 = vmatprep.subr.mxu0 0.0
        %1130 = vmatpush1.msra.mxu0 0.0
        %1131 = vmatprep.subr.mxu0 0.0
        %1132 = vmatpush1.msra.mxu0 0.0
        %1133 = vmatprep.subr.mxu0 0.0
        %1134 = vmatpush1.msra.mxu0 0.0
        %1135 = vmatprep.subr.mxu0 0.0
        %1136 = vmatpush1.msra.mxu0 0.0
        %1137 = vmatprep.subr.mxu0 0.0
        %1138 = vmatpush1.msra.mxu0 0.0
        %1139 = vmatprep.subr.mxu0 0.0
        %1140 = vmatpush1.msra.mxu0 0.0
        %1141 = vmatprep.subr.mxu0 0.0
        %1142 = vmatpush1.msra.mxu0 0.0
        %1143 = vmatprep.subr.mxu0 0.0
        %1144 = vmatpush1.msra.mxu0 0.0
        %1145 = vmatprep.subr.mxu0 0.0
        %1146 = vmatpush1.msra.mxu0 0.0
        %1147 = vmatprep.subr.mxu0 0.0
        %1148 = vmatpush1.msra.mxu0 0.0
        %1149 = vmatprep.subr.mxu0 0.0
        %1150 = vmatpush1.msra.mxu0 0.0
        %1151 = vmatprep.mubr.f32.mxu0 0.0
        %1152 = vmatmul.mubr.f32.gmra.mrb[0].mxu0 %v1085
        %v1153 = vpop.f32.mrb[0].mxu0
        %v1154 = vadd.f32 0.0, %v1153
        %v1155 = vpop.f32.mrb[0].mxu0
        %1156 = vdwg.mxu0
        %1157 = vxpose.xlu0.b32.start [1/16] %v945, 128
        %1158 = vxpose.xlu0.b32.cont [2/16] 0.0, 128
        %1159 = vxpose.xlu0.b32.cont [3/16] 0.0, 128
        %1160 = vxpose.xlu0.b32.cont [4/16] 0.0, 128
        %1161 = vxpose.xlu0.b32.cont [5/16] 0.0, 128
        %1162 = vxpose.xlu0.b32.cont [6/16] 0.0, 128
        %1163 = vxpose.xlu0.b32.cont [7/16] 0.0, 128
        %1164 = vxpose.xlu0.b32.cont [8/16] 0.0, 128
        %1165 = vxpose.xlu0.b32.cont [9/16] 0.0, 128
        %1166 = vxpose.xlu0.b32.cont [10/16] 0.0, 128
        %1167 = vxpose.xlu0.b32.cont [11/16] 0.0, 128
        %1168 = vxpose.xlu0.b32.cont [12/16] 0.0, 128
        %1169 = vxpose.xlu0.b32.cont [13/16] 0.0, 128
        %1170 = vxpose.xlu0.b32.cont [14/16] 0.0, 128
        %1171 = vxpose.xlu0.b32.cont [15/16] 0.0, 128
        %1172 = vxpose.xlu0.b32.end [16/16] 0.0, 128
        %v1173 = vpop.trf.xlu0
        %v1174 = vpop.trf.xlu0
        %v1175 = vpop.trf.xlu0
        %v1176 = vpop.trf.xlu0
        %v1177 = vpop.trf.xlu0
        %v1178 = vpop.trf.xlu0
        %v1179 = vpop.trf.xlu0
        %v1180 = vpop.trf.xlu0
        %v1181 = vpop.trf.xlu0
        %v1182 = vpop.trf.xlu0
        %v1183 = vpop.trf.xlu0
        %v1184 = vpop.trf.xlu0
        %v1185 = vpop.trf.xlu0
        %v1186 = vpop.trf.xlu0
        %v1187 = vpop.trf.xlu0
        %v1188 = vpop.trf.xlu0
        %v1190 = vsel %vm890, %v1173, 0
        %1192 = vmatprep.subr.mxu0 0.0
        %1193 = vmatpush1.msra.mxu0 %v577
        %1194 = vmatprep.subr.mxu0 0.0
        %1195 = vmatpush1.msra.mxu0 0.0
        %1196 = vmatprep.subr.mxu0 0.0
        %1197 = vmatpush1.msra.mxu0 0.0
        %1198 = vmatprep.subr.mxu0 0.0
        %1199 = vmatpush1.msra.mxu0 0.0
        %1200 = vmatprep.subr.mxu0 0.0
        %1201 = vmatpush1.msra.mxu0 0.0
        %1202 = vmatprep.subr.mxu0 0.0
        %1203 = vmatpush1.msra.mxu0 0.0
        %1204 = vmatprep.subr.mxu0 0.0
        %1205 = vmatpush1.msra.mxu0 0.0
        %1206 = vmatprep.subr.mxu0 0.0
        %1207 = vmatpush1.msra.mxu0 0.0
        %1208 = vmatprep.subr.mxu0 0.0
        %1209 = vmatpush1.msra.mxu0 0.0
        %1210 = vmatprep.subr.mxu0 0.0
        %1211 = vmatpush1.msra.mxu0 0.0
        %1212 = vmatprep.subr.mxu0 0.0
        %1213 = vmatpush1.msra.mxu0 0.0
        %1214 = vmatprep.subr.mxu0 0.0
        %1215 = vmatpush1.msra.mxu0 0.0
        %1216 = vmatprep.subr.mxu0 0.0
        %1217 = vmatpush1.msra.mxu0 0.0
        %1218 = vmatprep.subr.mxu0 0.0
        %1219 = vmatpush1.msra.mxu0 0.0
        %1220 = vmatprep.subr.mxu0 0.0
        %1221 = vmatpush1.msra.mxu0 0.0
        %1222 = vmatprep.subr.mxu0 0.0
        %1223 = vmatpush1.msra.mxu0 0.0
        %1224 = vmatprep.subr.mxu0 0.0
        %1225 = vmatpush1.msra.mxu0 0.0
        %1226 = vmatprep.subr.mxu0 0.0
        %1227 = vmatpush1.msra.mxu0 0.0
        %1228 = vmatprep.subr.mxu0 0.0
        %1229 = vmatpush1.msra.mxu0 0.0
        %1230 = vmatprep.subr.mxu0 0.0
        %1231 = vmatpush1.msra.mxu0 0.0
        %1232 = vmatprep.subr.mxu0 0.0
        %1233 = vmatpush1.msra.mxu0 0.0
        %1234 = vmatprep.subr.mxu0 0.0
        %1235 = vmatpush1.msra.mxu0 0.0
        %1236 = vmatprep.subr.mxu0 0.0
        %1237 = vmatpush1.msra.mxu0 0.0
        %1238 = vmatprep.subr.mxu0 0.0
        %1239 = vmatpush1.msra.mxu0 0.0
        %1240 = vmatprep.subr.mxu0 0.0
        %1241 = vmatpush1.msra.mxu0 0.0
        %1242 = vmatprep.subr.mxu0 0.0
        %1243 = vmatpush1.msra.mxu0 0.0
        %1244 = vmatprep.subr.mxu0 0.0
        %1245 = vmatpush1.msra.mxu0 0.0
        %1246 = vmatprep.subr.mxu0 0.0
        %1247 = vmatpush1.msra.mxu0 0.0
        %1248 = vmatprep.subr.mxu0 0.0
        %1249 = vmatpush1.msra.mxu0 0.0
        %1250 = vmatprep.subr.mxu0 0.0
        %1251 = vmatpush1.msra.mxu0 0.0
        %1252 = vmatprep.subr.mxu0 0.0
        %1253 = vmatpush1.msra.mxu0 0.0
        %1254 = vmatprep.subr.mxu0 0.0
        %1255 = vmatpush1.msra.mxu0 0.0
        %1256 = vmatprep.mubr.f32.mxu0 0.0
        %1257 = vmatmul.mubr.f32.gmra.mrb[0].mxu0 %v1190
        %v1258 = vpop.f32.mrb[0].mxu0
        %v1259 = vadd.f32 0.0, %v1258
        %v1260 = vpop.f32.mrb[0].mxu0
        %1261 = vdwg.mxu0
        %1262 = vxpose.xlu0.b32.start [1/16] %v946, 128
        %1263 = vxpose.xlu0.b32.cont [2/16] 0.0, 128
        %1264 = vxpose.xlu0.b32.cont [3/16] 0.0, 128
        %1265 = vxpose.xlu0.b32.cont [4/16] 0.0, 128
        %1266 = vxpose.xlu0.b32.cont [5/16] 0.0, 128
        %1267 = vxpose.xlu0.b32.cont [6/16] 0.0, 128
        %1268 = vxpose.xlu0.b32.cont [7/16] 0.0, 128
        %1269 = vxpose.xlu0.b32.cont [8/16] 0.0, 128
        %1270 = vxpose.xlu0.b32.cont [9/16] 0.0, 128
        %1271 = vxpose.xlu0.b32.cont [10/16] 0.0, 128
        %1272 = vxpose.xlu0.b32.cont [11/16] 0.0, 128
        %1273 = vxpose.xlu0.b32.cont [12/16] 0.0, 128
        %1274 = vxpose.xlu0.b32.cont [13/16] 0.0, 128
        %1275 = vxpose.xlu0.b32.cont [14/16] 0.0, 128
        %1276 = vxpose.xlu0.b32.cont [15/16] 0.0, 128
        %1277 = vxpose.xlu0.b32.end [16/16] 0.0, 128
        %v1278 = vpop.trf.xlu0
        %v1279 = vpop.trf.xlu0
        %v1280 = vpop.trf.xlu0
        %v1281 = vpop.trf.xlu0
        %v1282 = vpop.trf.xlu0
        %v1283 = vpop.trf.xlu0
        %v1284 = vpop.trf.xlu0
        %v1285 = vpop.trf.xlu0
        %v1286 = vpop.trf.xlu0
        %v1287 = vpop.trf.xlu0
        %v1288 = vpop.trf.xlu0
        %v1289 = vpop.trf.xlu0
        %v1290 = vpop.trf.xlu0
        %v1291 = vpop.trf.xlu0
        %v1292 = vpop.trf.xlu0
        %v1293 = vpop.trf.xlu0
        %v1295 = vsel %vm890, %v1278, 0
        %1297 = vmatprep.subr.mxu0 0.0
        %1298 = vmatpush1.msra.mxu0 %v582
        %1299 = vmatprep.subr.mxu0 0.0
        %1300 = vmatpush1.msra.mxu0 0.0
        %1301 = vmatprep.subr.mxu0 0.0
        %1302 = vmatpush1.msra.mxu0 0.0
        %1303 = vmatprep.subr.mxu0 0.0
        %1304 = vmatpush1.msra.mxu0 0.0
        %1305 = vmatprep.subr.mxu0 0.0
        %1306 = vmatpush1.msra.mxu0 0.0
        %1307 = vmatprep.subr.mxu0 0.0
        %1308 = vmatpush1.msra.mxu0 0.0
        %1309 = vmatprep.subr.mxu0 0.0
        %1310 = vmatpush1.msra.mxu0 0.0
        %1311 = vmatprep.subr.mxu0 0.0
        %1312 = vmatpush1.msra.mxu0 0.0
        %1313 = vmatprep.subr.mxu0 0.0
        %1314 = vmatpush1.msra.mxu0 0.0
        %1315 = vmatprep.subr.mxu0 0.0
        %1316 = vmatpush1.msra.mxu0 0.0
        %1317 = vmatprep.subr.mxu0 0.0
        %1318 = vmatpush1.msra.mxu0 0.0
        %1319 = vmatprep.subr.mxu0 0.0
        %1320 = vmatpush1.msra.mxu0 0.0
        %1321 = vmatprep.subr.mxu0 0.0
        %1322 = vmatpush1.msra.mxu0 0.0
        %1323 = vmatprep.subr.mxu0 0.0
        %1324 = vmatpush1.msra.mxu0 0.0
        %1325 = vmatprep.subr.mxu0 0.0
        %1326 = vmatpush1.msra.mxu0 0.0
        %1327 = vmatprep.subr.mxu0 0.0
        %1328 = vmatpush1.msra.mxu0 0.0
        %1329 = vmatprep.subr.mxu0 0.0
        %1330 = vmatpush1.msra.mxu0 0.0
        %1331 = vmatprep.subr.mxu0 0.0
        %1332 = vmatpush1.msra.mxu0 0.0
        %1333 = vmatprep.subr.mxu0 0.0
        %1334 = vmatpush1.msra.mxu0 0.0
        %1335 = vmatprep.subr.mxu0 0.0
        %1336 = vmatpush1.msra.mxu0 0.0
        %1337 = vmatprep.subr.mxu0 0.0
        %1338 = vmatpush1.msra.mxu0 0.0
        %1339 = vmatprep.subr.mxu0 0.0
        %1340 = vmatpush1.msra.mxu0 0.0
        %1341 = vmatprep.subr.mxu0 0.0
        %1342 = vmatpush1.msra.mxu0 0.0
        %1343 = vmatprep.subr.mxu0 0.0
        %1344 = vmatpush1.msra.mxu0 0.0
        %1345 = vmatprep.subr.mxu0 0.0
        %1346 = vmatpush1.msra.mxu0 0.0
        %1347 = vmatprep.subr.mxu0 0.0
        %1348 = vmatpush1.msra.mxu0 0.0
        %1349 = vmatprep.subr.mxu0 0.0
        %1350 = vmatpush1.msra.mxu0 0.0
        %1351 = vmatprep.subr.mxu0 0.0
        %1352 = vmatpush1.msra.mxu0 0.0
        %1353 = vmatprep.subr.mxu0 0.0
        %1354 = vmatpush1.msra.mxu0 0.0
        %1355 = vmatprep.subr.mxu0 0.0
        %1356 = vmatpush1.msra.mxu0 0.0
        %1357 = vmatprep.subr.mxu0 0.0
        %1358 = vmatpush1.msra.mxu0 0.0
        %1359 = vmatprep.subr.mxu0 0.0
        %1360 = vmatpush1.msra.mxu0 0.0
        %1361 = vmatprep.mubr.f32.mxu0 0.0
        %1362 = vmatmul.mubr.f32.gmra.mrb[0].mxu0 %v1295
        %v1363 = vpop.f32.mrb[0].mxu0
        %v1364 = vadd.f32 0.0, %v1363
        %v1365 = vpop.f32.mrb[0].mxu0
        %1366 = vdwg.mxu0
        %1367 = vst.msk [vmem:[%s290] sm:$0xff] %vm309, %v1049
        %1368 = vst.msk [vmem:[%s290 + $0x8] sm:$0xff] %vm309, %v1154
        %1369 = vst.msk [vmem:[%s290 + $0x10] sm:$0xff] %vm309, %v1259
        %1370 = vst.msk [vmem:[%s290 + $0x18] sm:$0xff] %vm309, %v1364
        %v1371 = vadd.f32 %v1049, %v301
        %v1372 = vadd.f32 %v1154, %v302
        %v1373 = vadd.f32 %v1259, %v303
        %v1374 = vadd.f32 %v1364, %v304
        %1375 = vst.msk [vmem:[%s297] sm:$0xff] %vm309, %v1371
        %1376 = vst.msk [vmem:[%s297 + $0x8] sm:$0xff] %vm309, %v1372
        %1377 = vst.msk [vmem:[%s297 + $0x10] sm:$0xff] %vm309, %v1373
        %1378 = vst.msk [vmem:[%s297 + $0x18] sm:$0xff] %vm309, %v1374
        %s1379 = sand.u32 %s125, 1
        %s1380 = scalar_lea.sflag [#allocation4], %s1379
        %s1381 = sand.u32 %s125, 1
        %s1382 = smul.addr %s1381, 32
        %s1383 = scalar_lea.vmem [#allocation10], %s1382
        %s1384 = sand.u32 %s151, 1
        %s1385 = scalar_lea.sflag [#allocation12], %s1384
        %s1386 = sand.u32 %s151, 1
        %s1387 = smul.addr %s1386, 32
        %s1388 = scalar_lea.vmem [#allocation11], %s1387
        // Predicated region
        $region53: #{tpu_custom_call.1} parent=35 // pred_check
          %p1389 = pneg %p135
        $region54: #{tpu_custom_call.1} parent=35 // pred_check_branch
          %1391 = sbr.rel (%p1389) target = $region56
        $region55: #{tpu_custom_call.1} parent=35 // pred_region
          %s1392 = smul.u32 4, %s28
          %s1394 = ssub.s32 512, 512
          %1395 = vsyncadd %s1380, %s1394
          %s1396 = smul.addr %s1392, 128
          %s1397 = scalar_lea.hbm %s4, %s1396
          %s1398 = sshll.u32 %s1383, 4
          %s1399 = int_to_ptr.vmem [resolvable:$true] %s1398
          %1404 = dma.vmem_to_hbm [thread:$0]  %s1399, 512, %s1397, %s1380, 128, 128, 8
        $region56: #{tpu_custom_call.1} parent=35 // pred_fallthru
          _
        // Predicated region
        $region57: #{tpu_custom_call.1} parent=35 // pred_check
          %p1405 = pneg %p161
        $region58: #{tpu_custom_call.1} parent=35 // pred_check_branch
          %1407 = sbr.rel (%p1405) target = $region60
        $region59: #{tpu_custom_call.1} parent=35 // pred_region
          %s1408 = smul.u32 4, %s28
          %s1410 = ssub.s32 512, 512
          %1411 = vsyncadd %s1385, %s1410
          %s1412 = smul.addr %s1408, 128
          %s1413 = scalar_lea.hbm %s5, %s1412
          %s1414 = sshll.u32 %s1388, 4
          %s1415 = int_to_ptr.vmem [resolvable:$true] %s1414
          %1420 = dma.vmem_to_hbm [thread:$0]  %s1415, 512, %s1413, %s1385, 128, 128, 8
        $region60: #{tpu_custom_call.1} parent=35 // pred_fallthru
          _
      $region36: #{tpu_custom_call.1} parent=5 // pred_fallthru
        _
      %p1421 = scmp.le.s32.totalorder 2, %s23
      // Predicated region
      $region61: #{tpu_custom_call.1} parent=5 // pred_check
        %p1422 = pneg %p1421
      $region62: #{tpu_custom_call.1} parent=5 // pred_check_branch
        %1424 = sbr.rel (%p1422) target = $region64
      $region63: #{tpu_custom_call.1} parent=5 // pred_region
        %s1425 = ssub.s32 %s23, 2
        // Predicated region
        $region65: #{tpu_custom_call.1} parent=63 // pred_check
          %p1426 = pneg %p141
        $region66: #{tpu_custom_call.1} parent=63 // pred_check_branch
          %1428 = sbr.rel (%p1426) target = $region68
        $region67: #{tpu_custom_call.1} parent=63 // pred_region
          %s1429 = sand.u32 %s126, 1
          %s1430 = scalar_lea.sflag [#allocation4], %s1429
          %s1431 = sand.u32 %s126, 1
          %s1432 = smul.addr %s1431, 32
          %s1433 = scalar_lea.vmem [#allocation10], %s1432
          %1434 = dma.done %s1430, 512
        $region68: #{tpu_custom_call.1} parent=63 // pred_fallthru
          _
        // Predicated region
        $region69: #{tpu_custom_call.1} parent=63 // pred_check
          %p1435 = pneg %p167
        $region70: #{tpu_custom_call.1} parent=63 // pred_check_branch
          %1437 = sbr.rel (%p1435) target = $region72
        $region71: #{tpu_custom_call.1} parent=63 // pred_region
          %s1438 = sand.u32 %s152, 1
          %s1439 = scalar_lea.sflag [#allocation12], %s1438
          %s1440 = sand.u32 %s152, 1
          %s1441 = smul.addr %s1440, 32
          %s1442 = scalar_lea.vmem [#allocation11], %s1441
          %1443 = dma.done %s1439, 512
        $region72: #{tpu_custom_call.1} parent=63 // pred_fallthru
          _
      $region64: #{tpu_custom_call.1} parent=5 // pred_fallthru
        _
    $region6: #{tpu_custom_call.1} parent=1 // loop_footer
      %s27 = sadd.s32 1, %s23
    $region7: #{tpu_custom_call.1} parent=1 // loop_footer_branch
      %22 = sbr.rel target = $region3
    $region8: #{tpu_custom_call.1} parent=1 // loop_exit
      _
    %1444 = vsyncpa [#allocation3], 1
    %s1445 = scalar_lea.sflag [#allocation3], 1
    %1446 = vsyncpa %s1445, 1
    %1447 = vsyncpa [#allocation6], 1
    %1448 = vsyncpa [#allocation9], 1
    %1449 = vsyncpa [#allocation4], 1
    %s1450 = scalar_lea.sflag [#allocation4], 1
    %1451 = vsyncpa %s1450, 1
    %1452 = vsyncpa [#allocation12], 1
    %s1453 = scalar_lea.sflag [#allocation12], 1
    %1454 = vsyncpa %s1453, 1

</llo_original>
